<compile_context>
chip_gen: v7x
topology: tpu7x:2x2x1
jax: 0.10.0
libtpu: 0.0.40
codegen_flags: <defaults>
</compile_context>

<pallas_src>
import functools

import jax
import jax.numpy as jnp
import numpy as np
from jax import lax
from jax.experimental import pallas as pl
from jax.experimental.pallas import tpu as pltpu


def _round_up(x, m):
    return (x + m - 1) // m * m


# ---------------------------------------------------------------------------
# Fused kernel
# ---------------------------------------------------------------------------
def _fused_res_block_kernel(*refs, stride, width, hs, has_sc, cin_p, cout_p):
    # ---- unpack refs (inputs, output, scratches) ---------------------------
    idx = 0
    x_phase_refs = refs[idx:idx + stride]; idx += stride
    w1_ref = refs[idx]; idx += 1
    b1_ref = refs[idx]; idx += 1
    w2_ref = refs[idx]; idx += 1
    b2_ref = refs[idx]; idx += 1
    if has_sc:
        wsc_ref = refs[idx]; idx += 1
        bsc_ref = refs[idx]; idx += 1
    o_ref = refs[idx]; idx += 1
    ph_scr = refs[idx:idx + stride]; idx += stride     # padded flat x phases (bf16)
    o1pad_scr = refs[idx]; idx += 1                    # padded flat out1     (bf16)
    p1_scr = refs[idx]; idx += 1                       # im2col for conv1     (bf16)
    p2_scr = refs[idx]; idx += 1                       # im2col for conv2     (bf16)

    W = width
    M = hs * W            # flattened strided spatial size (lane axis)
    OFF = 2 * W           # head pad width inside the flat padded scratches
    PAD = 2 * W           # tail pad width

    # width-boundary validity masks for the +/-1 column taps (built once)
    wo = lax.broadcasted_iota(jnp.int32, (1, M), 1) % W
    ok_m1 = wo >= 1            # dw = -1 valid
    ok_p1 = wo < (W - 1)       # dw = +1 valid

    def im2col(src_scratches, phase_of, row_shift_of, p_scr, cp):
        """Gather the 9 shifted taps (flat, lane-dense, bf16) into im2col buf."""
        # hoist the (cp, M) mask broadcasts out of the 9-tap loop
        masks = {-1: jnp.broadcast_to(ok_m1, (cp, M)),
                 0: None,
                 1: jnp.broadcast_to(ok_p1, (cp, M))}
        for kh in range(3):
            src = src_scratches[phase_of(kh)]
            q = row_shift_of(kh)
            for kw in range(3):
                dw = kw - 1
                start = OFF + q * W + dw            # static, always >= 0
                piece = src[:, start:start + M]     # (cp, M) bf16
                if masks[dw] is not None:
                    piece = jnp.where(masks[dw], piece, 0)
                t = kh * 3 + kw
                p_scr[t * cp:(t + 1) * cp, :] = piece

    # ---- stage 0: pad-zeroing (only 2W head + 2W tail) + interior copy -----
    for r in range(stride):
        ph_scr[r][:, :OFF] = jnp.zeros((cin_p, OFF), jnp.bfloat16)
        ph_scr[r][:, OFF + M:OFF + M + PAD] = jnp.zeros((cin_p, PAD), jnp.bfloat16)
        ph_scr[r][:, OFF:OFF + M] = x_phase_refs[r][0]

    # ---- stage 1: conv1 (only at strided output rows) + bn1 + relu ---------
    # input row for output row ho, tap kh is  stride*ho + (kh-1), i.e. phase
    # (kh-1) % stride of x, at row  ho + ((kh-1) - phase)//stride.
    im2col(ph_scr,
           phase_of=lambda kh: (kh - 1) % stride,
           row_shift_of=lambda kh: ((kh - 1) - ((kh - 1) % stride)) // stride,
           p_scr=p1_scr, cp=cin_p)
    acc1 = jnp.dot(w1_ref[...], p1_scr[...], preferred_element_type=jnp.float32)
    out1 = jnp.maximum(acc1 + b1_ref[...], 0.0)             # (cout_p, M) f32

    # ---- stage 2: conv2 (stride 1) + bn2 ------------------------------------
    o1pad_scr[:, :OFF] = jnp.zeros((cout_p, OFF), jnp.bfloat16)
    o1pad_scr[:, OFF + M:OFF + M + PAD] = jnp.zeros((cout_p, PAD), jnp.bfloat16)
    o1pad_scr[:, OFF:OFF + M] = out1.astype(jnp.bfloat16)
    im2col([o1pad_scr],
           phase_of=lambda kh: 0,
           row_shift_of=lambda kh: kh - 1,
           p_scr=p2_scr, cp=cout_p)
    acc2 = jnp.dot(w2_ref[...], p2_scr[...],
                   preferred_element_type=jnp.float32) + b2_ref[...]

    # ---- stage 3: shortcut (1x1 conv + bn, or identity) ---------------------
    xs = x_phase_refs[0][0]                                  # bf16, rows stride*ho
    if has_sc:
        sc = jnp.dot(wsc_ref[...], xs,
                     preferred_element_type=jnp.float32) + bsc_ref[...]
    else:
        sc = xs.astype(jnp.float32)                          # identity

    # ---- stage 4: residual add + relu, lane-dense store ---------------------
    o_ref[0] = jnp.maximum(acc2 + sc, 0.0).astype(o_ref.dtype)


# ---------------------------------------------------------------------------
# Wrapper: parameter folding / packing + pallas_call
# ---------------------------------------------------------------------------
def _fold_bn(w, gamma, beta, mean, var, eps=1e-5):
    s = gamma / jnp.sqrt(var + eps)
    return w * s[:, None, None, None], beta - mean * s


def _pack_weight(w, cin_p, cout_p):
    O, I, KH, KW = w.shape
    w = jnp.pad(w, ((0, cout_p - O), (0, cin_p - I), (0, 0), (0, 0)))
    w = jnp.transpose(w, (0, 2, 3, 1)).reshape(cout_p, KH * KW * cin_p)
    return w.astype(jnp.bfloat16)


def _pack_bias(b, cout_p):
    return jnp.pad(b, (0, cout_p - b.shape[0])).reshape(cout_p, 1).astype(jnp.float32)


@functools.partial(jax.jit, static_argnames=("stride",))
def basic_res_block(x_nchw, params, *, stride):
    N, Cin, H, W = x_nchw.shape
    planes = params["w1"].shape[0]
    assert H % stride == 0, "H must be divisible by the stride"
    Hs = H // stride
    M = Hs * W
    L = (Hs + 4) * W                       # flat padded scratch length

    # channels padded to multiples of 16 -> bf16 sublane-tile aligned offsets
    cin_p = _round_up(Cin, 16)
    cout_p = _round_up(planes, 16)
    has_sc = (stride != 1) or (Cin != planes)

    # --- one fused XLA pass over the (small) input: cast to bf16, pad
    #     channels, split the H-stride phases, flattened lane-dense.
    x = x_nchw.astype(jnp.bfloat16)
    if cin_p != Cin:
        x = jnp.pad(x, ((0, 0), (0, cin_p - Cin), (0, 0), (0, 0)))
    phases = [x[:, :, r::stride, :].reshape(N, cin_p, M) for r in range(stride)]

    # --- fold BN (eval mode) into the conv weights ---------------------------
    w1, b1 = _fold_bn(params["w1"], params["g1"], params["b1"],
                      params["m1"], params["v1"])
    w2, b2 = _fold_bn(params["w2"], params["g2"], params["b2"],
                      params["m2"], params["v2"])
    inputs = phases + [_pack_weight(w1, cin_p, cout_p), _pack_bias(b1, cout_p),
                       _pack_weight(w2, cout_p, cout_p), _pack_bias(b2, cout_p)]
    if has_sc:
        wsc, bsc = _fold_bn(params["w_sc"], params["g_sc"], params["b_sc"],
                            params["m_sc"], params["v_sc"])
        inputs += [_pack_weight(wsc, cin_p, cout_p), _pack_bias(bsc, cout_p)]

    in_specs = ([pl.BlockSpec((1, cin_p, M), lambda n: (n, 0, 0))
                 for _ in range(stride)]
                + [pl.BlockSpec(a.shape, lambda n: (0, 0))
                   for a in inputs[stride:]])

    # --- explicit scoped-VMEM budget (scratch + double-buffered blocks) ------
    BF = 2
    vmem_need = (
        2 * stride * cin_p * M * BF                         # x phase blocks (x2)
        + 2 * cout_p * M * BF                               # output block (x2)
        + 2 * (cout_p * 9 * cin_p * BF + cout_p * 4)        # w1, b1 (x2)
        + 2 * (cout_p * 9 * cout_p * BF + cout_p * 4)       # w2, b2 (x2)
        + (2 * (cout_p * cin_p * BF + cout_p * 4) if has_sc else 0)
        + stride * cin_p * L * BF + cout_p * L * BF         # padded scratches
        + 9 * cin_p * M * BF + 9 * cout_p * M * BF)         # im2col scratches
    vmem_limit = int(min(max(vmem_need * 3 // 2, 32 * 2 ** 20), 100 * 2 ** 20))

    kern = functools.partial(_fused_res_block_kernel, stride=stride, width=W,
                             hs=Hs, has_sc=has_sc, cin_p=cin_p, cout_p=cout_p)

    out = pl.pallas_call(
        kern,
        out_shape=jax.ShapeDtypeStruct((N, cout_p, M), jnp.bfloat16),
        grid=(N,),
        in_specs=in_specs,
        out_specs=pl.BlockSpec((1, cout_p, M), lambda n: (n, 0, 0)),
        scratch_shapes=(
            [pltpu.VMEM((cin_p, L), jnp.bfloat16) for _ in range(stride)]
            + [pltpu.VMEM((cout_p, L), jnp.bfloat16),
               pltpu.VMEM((9 * cin_p, M), jnp.bfloat16),
               pltpu.VMEM((9 * cout_p, M), jnp.bfloat16)]),
        compiler_params=pltpu.CompilerParams(
            dimension_semantics=("parallel",),
            vmem_limit_bytes=vmem_limit),
    )(*inputs)

    if cout_p != planes:
        out = out[:, :planes, :]
    return out.reshape(N, planes, Hs, W)          # bf16


# ---------------------------------------------------------------------------
# Pure-JAX reference (NCHW, lax.conv, f32) for correctness checking
# ---------------------------------------------------------------------------
def _ref_block(x, params, *, stride):
    def conv(v, w, strides, pad):
        return lax.conv_general_dilated(
            v, w, window_strides=strides, padding=[(pad, pad), (pad, pad)],
            dimension_numbers=("NCHW", "OIHW", "NCHW"))

    def bn(v, g, b, m, var, eps=1e-5):
        s = g / jnp.sqrt(var + eps)
        return v * s[None, :, None, None] + (b - m * s)[None, :, None, None]

    planes = params["w1"].shape[0]
    out = jax.nn.relu(bn(conv(x, params["w1"], (stride, 1), 1),
                         params["g1"], params["b1"], params["m1"], params["v1"]))
    out = bn(conv(out, params["w2"], (1, 1), 1),
             params["g2"], params["b2"], params["m2"], params["v2"])
    if stride != 1 or x.shape[1] != planes:
        sc = bn(conv(x, params["w_sc"], (stride, 1), 0),
                params["g_sc"], params["b_sc"], params["m_sc"], params["v_sc"])
    else:
        sc = x
    return jax.nn.relu(out + sc)


# ---------------------------------------------------------------------------
def _make_bn(key, c):
    k = jax.random.split(key, 4)
    return (jax.random.uniform(k[0], (c,), jnp.float32, 0.5, 1.5),   # gamma
            0.1 * jax.random.normal(k[1], (c,), jnp.float32),        # beta
            0.1 * jax.random.normal(k[2], (c,), jnp.float32),        # mean
            jax.random.uniform(k[3], (c,), jnp.float32, 0.5, 1.5))   # var


def _make_params(key, in_planes, planes, with_sc):
    ks = jax.random.split(key, 6)
    g1, b1, m1, v1 = _make_bn(ks[1], planes)
    g2, b2, m2, v2 = _make_bn(ks[3], planes)
    p = dict(
        w1=0.1 * jax.random.normal(ks[0], (planes, in_planes, 3, 3), jnp.float32),
        g1=g1, b1=b1, m1=m1, v1=v1,
        w2=0.1 * jax.random.normal(ks[2], (planes, planes, 3, 3), jnp.float32),
        g2=g2, b2=b2, m2=m2, v2=v2)
    if with_sc:
        gs, bs, ms, vs = _make_bn(ks[5], planes)
        p.update(
            w_sc=0.1 * jax.random.normal(ks[4], (planes, in_planes, 1, 1),
                                         jnp.float32),
            g_sc=gs, b_sc=bs, m_sc=ms, v_sc=vs)
    return p


if __name__ == "__main__":
    key = jax.random.PRNGKey(0)
    kp1, kx1, kp2, kx2 = jax.random.split(key, 4)
    N, H, W = 2, 16, 16

    # case 1: stride 2, channel expansion -> conv + bn shortcut
    in_planes, planes, stride = 4, 8, 2
    params = _make_params(kp1, in_planes, planes, with_sc=True)
    x = jax.random.normal(kx1, (N, in_planes, H, W), jnp.float32)
    out = jax.block_until_ready(basic_res_block(x, params, stride=stride))
    ref = jax.block_until_ready(_ref_block(x, params, stride=stride))
    assert out.shape == ref.shape == (N, planes, H // stride, W), out.shape
    np.testing.assert_allclose(np.asarray(out.astype(jnp.float32)),
                               np.asarray(ref), rtol=4e-2, atol=4e-2)

    # case 2: stride 1, identity shortcut
    in_planes = planes = 8
    params = _make_params(kp2, in_planes, planes, with_sc=False)
    x = jax.random.normal(kx2, (N, in_planes, H, W), jnp.float32)
    out = jax.block_until_ready(basic_res_block(x, params, stride=1))
    ref = jax.block_until_ready(_ref_block(x, params, stride=1))
    assert out.shape == ref.shape == (N, planes, H, W), out.shape
    np.testing.assert_allclose(np.asarray(out.astype(jnp.float32)),
                               np.asarray(ref), rtol=4e-2, atol=4e-2)

    print("KERNEL_OK")
</pallas_src>

<mosaic_0001>
module attributes {stable_mosaic.version = 11 : i64} {
  func.func @_fused_res_block_kernel(%arg0: i32, %arg1: memref<1x16x128xbf16, #tpu.memory_space<vmem>>, %arg2: memref<1x16x128xbf16, #tpu.memory_space<vmem>>, %arg3: memref<16x144xbf16, #tpu.memory_space<vmem>>, %arg4: memref<16x1xf32, #tpu.memory_space<vmem>>, %arg5: memref<16x144xbf16, #tpu.memory_space<vmem>>, %arg6: memref<16x1xf32, #tpu.memory_space<vmem>>, %arg7: memref<16x16xbf16, #tpu.memory_space<vmem>>, %arg8: memref<16x1xf32, #tpu.memory_space<vmem>>, %arg9: memref<1x16x128xbf16, #tpu.memory_space<vmem>>, %arg10: memref<16x192xbf16, #tpu.memory_space<vmem>>, %arg11: memref<16x192xbf16, #tpu.memory_space<vmem>>, %arg12: memref<16x192xbf16, #tpu.memory_space<vmem>>, %arg13: memref<144x128xbf16, #tpu.memory_space<vmem>>, %arg14: memref<144x128xbf16, #tpu.memory_space<vmem>>) attributes {dimension_semantics = [#tpu.dimension_semantics<parallel>], iteration_bounds = array<i64: 2>, scalar_prefetch = 0 : i64, scratch_operands = 5 : i64, tpu.core_type = #tpu.core_type<tc>, window_params = [{transform_indices = @transform_0, window_bounds = array<i64: 1, 16, 128>}, {transform_indices = @transform_1, window_bounds = array<i64: 1, 16, 128>}, {pipeline_mode = #tpu.pipeline_mode<synchronous>, transform_indices = @transform_2, window_bounds = array<i64: 16, 144>}, {pipeline_mode = #tpu.pipeline_mode<synchronous>, transform_indices = @transform_3, window_bounds = array<i64: 16, 1>}, {pipeline_mode = #tpu.pipeline_mode<synchronous>, transform_indices = @transform_4, window_bounds = array<i64: 16, 144>}, {pipeline_mode = #tpu.pipeline_mode<synchronous>, transform_indices = @transform_5, window_bounds = array<i64: 16, 1>}, {pipeline_mode = #tpu.pipeline_mode<synchronous>, transform_indices = @transform_6, window_bounds = array<i64: 16, 16>}, {pipeline_mode = #tpu.pipeline_mode<synchronous>, transform_indices = @transform_7, window_bounds = array<i64: 16, 1>}, {transform_indices = @transform_8, window_bounds = array<i64: 1, 16, 128>}]} {
    %0 = tpu.iota {dimensions = array<i32: 1>} : vector<1x128xi32>
    %c16_i32 = arith.constant 16 : i32
    %c0_i32 = arith.constant 0 : i32
    %1 = arith.cmpi eq, %c16_i32, %c0_i32 : i32
    %c1_i32 = arith.constant 1 : i32
    %2 = arith.select %1, %c1_i32, %c16_i32 : i32
    %3 = vector.broadcast %2 : i32 to vector<1x128xi32>
    %4 = arith.remsi %0, %3 : vector<1x128xi32>
    %c0_i32_0 = arith.constant 0 : i32
    %5 = vector.broadcast %c0_i32_0 : i32 to vector<1x128xi32>
    %6 = arith.cmpi ne, %4, %5 : vector<1x128xi32>
    %c0_i32_1 = arith.constant 0 : i32
    %7 = vector.broadcast %c0_i32_1 : i32 to vector<1x128xi32>
    %8 = arith.cmpi slt, %4, %7 : vector<1x128xi32>
    %c0_i32_2 = arith.constant 0 : i32
    %9 = arith.cmpi slt, %2, %c0_i32_2 : i32
    %10 = vector.broadcast %9 : i1 to vector<1x128xi1>
    %11 = vector.broadcast %10 : vector<1x128xi1> to vector<1x128xi1>
    %12 = arith.xori %8, %11 : vector<1x128xi1>
    %13 = arith.andi %12, %6 : vector<1x128xi1>
    %14 = vector.broadcast %2 : i32 to vector<1x128xi32>
    %15 = arith.addi %4, %14 : vector<1x128xi32>
    %16 = arith.select %13, %15, %4 : vector<1x128xi1>, vector<1x128xi32>
    %c1_i32_3 = arith.constant 1 : i32
    %17 = vector.broadcast %c1_i32_3 : i32 to vector<1x128xi32>
    %18 = arith.cmpi sge, %16, %17 : vector<1x128xi32>
    %c15_i32 = arith.constant 15 : i32
    %19 = vector.broadcast %c15_i32 : i32 to vector<1x128xi32>
    %20 = arith.cmpi slt, %16, %19 : vector<1x128xi32>
    %cst = arith.constant 0.000000e+00 : bf16
    %21 = vector.broadcast %cst : bf16 to vector<16x32xbf16>
    %c0 = arith.constant 0 : index
    %c0_4 = arith.constant 0 : index
    %22 = vector.load %arg10[%c0, %c0_4] : memref<16x192xbf16, #tpu.memory_space<vmem>>, vector<16x32xbf16>
    tpu.vector_store %arg10[%c0, %c0_4], %21 {strides = array<i32>} : memref<16x192xbf16, #tpu.memory_space<vmem>>, vector<16x32xbf16>,
    %cst_5 = arith.constant 0.000000e+00 : bf16
    %23 = vector.broadcast %cst_5 : bf16 to vector<16x32xbf16>
    %c0_6 = arith.constant 0 : index
    %c160 = arith.constant 160 : index
    %24 = vector.load %arg10[%c0_6, %c160] : memref<16x192xbf16, #tpu.memory_space<vmem>>, vector<16x32xbf16>
    tpu.vector_store %arg10[%c0_6, %c160], %23 {strides = array<i32>} : memref<16x192xbf16, #tpu.memory_space<vmem>>, vector<16x32xbf16>,
    %c0_7 = arith.constant 0 : index
    %c0_8 = arith.constant 0 : index
    %c0_9 = arith.constant 0 : index
    %25 = vector.load %arg1[%c0_7, %c0_8, %c0_9] : memref<1x16x128xbf16, #tpu.memory_space<vmem>>, vector<1x16x128xbf16>
    %26 = vector.shape_cast %25 : vector<1x16x128xbf16> to vector<16x128xbf16>
    %c0_10 = arith.constant 0 : index
    %c32 = arith.constant 32 : index
    %27 = vector.load %arg10[%c0_10, %c32] : memref<16x192xbf16, #tpu.memory_space<vmem>>, vector<16x128xbf16>
    tpu.vector_store %arg10[%c0_10, %c32], %26 {strides = array<i32>} : memref<16x192xbf16, #tpu.memory_space<vmem>>, vector<16x128xbf16>,
    %cst_11 = arith.constant 0.000000e+00 : bf16
    %28 = vector.broadcast %cst_11 : bf16 to vector<16x32xbf16>
    %c0_12 = arith.constant 0 : index
    %c0_13 = arith.constant 0 : index
    %29 = vector.load %arg11[%c0_12, %c0_13] : memref<16x192xbf16, #tpu.memory_space<vmem>>, vector<16x32xbf16>
    tpu.vector_store %arg11[%c0_12, %c0_13], %28 {strides = array<i32>} : memref<16x192xbf16, #tpu.memory_space<vmem>>, vector<16x32xbf16>,
    %cst_14 = arith.constant 0.000000e+00 : bf16
    %30 = vector.broadcast %cst_14 : bf16 to vector<16x32xbf16>
    %c0_15 = arith.constant 0 : index
    %c160_16 = arith.constant 160 : index
    %31 = vector.load %arg11[%c0_15, %c160_16] : memref<16x192xbf16, #tpu.memory_space<vmem>>, vector<16x32xbf16>
    tpu.vector_store %arg11[%c0_15, %c160_16], %30 {strides = array<i32>} : memref<16x192xbf16, #tpu.memory_space<vmem>>, vector<16x32xbf16>,
    %c0_17 = arith.constant 0 : index
    %c0_18 = arith.constant 0 : index
    %c0_19 = arith.constant 0 : index
    %32 = vector.load %arg2[%c0_17, %c0_18, %c0_19] : memref<1x16x128xbf16, #tpu.memory_space<vmem>>, vector<1x16x128xbf16>
    %33 = vector.shape_cast %32 : vector<1x16x128xbf16> to vector<16x128xbf16>
    %c0_20 = arith.constant 0 : index
    %c32_21 = arith.constant 32 : index
    %34 = vector.load %arg11[%c0_20, %c32_21] : memref<16x192xbf16, #tpu.memory_space<vmem>>, vector<16x128xbf16>
    tpu.vector_store %arg11[%c0_20, %c32_21], %33 {strides = array<i32>} : memref<16x192xbf16, #tpu.memory_space<vmem>>, vector<16x128xbf16>,
    %35 = vector.shape_cast %18 : vector<1x128xi1> to vector<1x128xi1>
    %36 = vector.broadcast %35 : vector<1x128xi1> to vector<16x128xi1>
    %37 = vector.shape_cast %20 : vector<1x128xi1> to vector<1x128xi1>
    %38 = vector.broadcast %37 : vector<1x128xi1> to vector<16x128xi1>
    %c0_22 = arith.constant 0 : index
    %c15 = arith.constant 15 : index
    %39 = vector.load %arg11[%c0_22, %c15] : memref<16x192xbf16, #tpu.memory_space<vmem>>, vector<16x128xbf16>
    %c0_i32_23 = arith.constant 0 : i32
    %40 = arith.sitofp %c0_i32_23 : i32 to bf16
    %41 = vector.broadcast %40 : bf16 to vector<16x128xbf16>
    %42 = arith.select %36, %39, %41 : vector<16x128xi1>, vector<16x128xbf16>
    %c0_24 = arith.constant 0 : index
    %c0_25 = arith.constant 0 : index
    %43 = vector.load %arg13[%c0_24, %c0_25] : memref<144x128xbf16, #tpu.memory_space<vmem>>, vector<16x128xbf16>
    tpu.vector_store %arg13[%c0_24, %c0_25], %42 {strides = array<i32>} : memref<144x128xbf16, #tpu.memory_space<vmem>>, vector<16x128xbf16>,
    %c0_26 = arith.constant 0 : index
    %c16 = arith.constant 16 : index
    %44 = vector.load %arg11[%c0_26, %c16] : memref<16x192xbf16, #tpu.memory_space<vmem>>, vector<16x128xbf16>
    %c16_27 = arith.constant 16 : index
    %c0_28 = arith.constant 0 : index
    %45 = vector.load %arg13[%c16_27, %c0_28] : memref<144x128xbf16, #tpu.memory_space<vmem>>, vector<16x128xbf16>
    tpu.vector_store %arg13[%c16_27, %c0_28], %44 {strides = array<i32>} : memref<144x128xbf16, #tpu.memory_space<vmem>>, vector<16x128xbf16>,
    %c0_29 = arith.constant 0 : index
    %c17 = arith.constant 17 : index
    %46 = vector.load %arg11[%c0_29, %c17] : memref<16x192xbf16, #tpu.memory_space<vmem>>, vector<16x128xbf16>
    %c0_i32_30 = arith.constant 0 : i32
    %47 = arith.sitofp %c0_i32_30 : i32 to bf16
    %48 = vector.broadcast %47 : bf16 to vector<16x128xbf16>
    %49 = arith.select %38, %46, %48 : vector<16x128xi1>, vector<16x128xbf16>
    %c32_31 = arith.constant 32 : index
    %c0_32 = arith.constant 0 : index
    %50 = vector.load %arg13[%c32_31, %c0_32] : memref<144x128xbf16, #tpu.memory_space<vmem>>, vector<16x128xbf16>
    tpu.vector_store %arg13[%c32_31, %c0_32], %49 {strides = array<i32>} : memref<144x128xbf16, #tpu.memory_space<vmem>>, vector<16x128xbf16>,
    %c0_33 = arith.constant 0 : index
    %c31 = arith.constant 31 : index
    %51 = vector.load %arg10[%c0_33, %c31] : memref<16x192xbf16, #tpu.memory_space<vmem>>, vector<16x128xbf16>
    %c0_i32_34 = arith.constant 0 : i32
    %52 = arith.sitofp %c0_i32_34 : i32 to bf16
    %53 = vector.broadcast %52 : bf16 to vector<16x128xbf16>
    %54 = arith.select %36, %51, %53 : vector<16x128xi1>, vector<16x128xbf16>
    %c48 = arith.constant 48 : index
    %c0_35 = arith.constant 0 : index
    %55 = vector.load %arg13[%c48, %c0_35] : memref<144x128xbf16, #tpu.memory_space<vmem>>, vector<16x128xbf16>
    tpu.vector_store %arg13[%c48, %c0_35], %54 {strides = array<i32>} : memref<144x128xbf16, #tpu.memory_space<vmem>>, vector<16x128xbf16>,
    %c0_36 = arith.constant 0 : index
    %c32_37 = arith.constant 32 : index
    %56 = vector.load %arg10[%c0_36, %c32_37] : memref<16x192xbf16, #tpu.memory_space<vmem>>, vector<16x128xbf16>
    %c64 = arith.constant 64 : index
    %c0_38 = arith.constant 0 : index
    %57 = vector.load %arg13[%c64, %c0_38] : memref<144x128xbf16, #tpu.memory_space<vmem>>, vector<16x128xbf16>
    tpu.vector_store %arg13[%c64, %c0_38], %56 {strides = array<i32>} : memref<144x128xbf16, #tpu.memory_space<vmem>>, vector<16x128xbf16>,
    %c0_39 = arith.constant 0 : index
    %c33 = arith.constant 33 : index
    %58 = vector.load %arg10[%c0_39, %c33] : memref<16x192xbf16, #tpu.memory_space<vmem>>, vector<16x128xbf16>
    %c0_i32_40 = arith.constant 0 : i32
    %59 = arith.sitofp %c0_i32_40 : i32 to bf16
    %60 = vector.broadcast %59 : bf16 to vector<16x128xbf16>
    %61 = arith.select %38, %58, %60 : vector<16x128xi1>, vector<16x128xbf16>
    %c80 = arith.constant 80 : index
    %c0_41 = arith.constant 0 : index
    %62 = vector.load %arg13[%c80, %c0_41] : memref<144x128xbf16, #tpu.memory_space<vmem>>, vector<16x128xbf16>
    tpu.vector_store %arg13[%c80, %c0_41], %61 {strides = array<i32>} : memref<144x128xbf16, #tpu.memory_space<vmem>>, vector<16x128xbf16>,
    %c0_42 = arith.constant 0 : index
    %c31_43 = arith.constant 31 : index
    %63 = vector.load %arg11[%c0_42, %c31_43] : memref<16x192xbf16, #tpu.memory_space<vmem>>, vector<16x128xbf16>
    %c0_i32_44 = arith.constant 0 : i32
    %64 = arith.sitofp %c0_i32_44 : i32 to bf16
    %65 = vector.broadcast %64 : bf16 to vector<16x128xbf16>
    %66 = arith.select %36, %63, %65 : vector<16x128xi1>, vector<16x128xbf16>
    %c96 = arith.constant 96 : index
    %c0_45 = arith.constant 0 : index
    %67 = vector.load %arg13[%c96, %c0_45] : memref<144x128xbf16, #tpu.memory_space<vmem>>, vector<16x128xbf16>
    tpu.vector_store %arg13[%c96, %c0_45], %66 {strides = array<i32>} : memref<144x128xbf16, #tpu.memory_space<vmem>>, vector<16x128xbf16>,
    %c0_46 = arith.constant 0 : index
    %c32_47 = arith.constant 32 : index
    %68 = vector.load %arg11[%c0_46, %c32_47] : memref<16x192xbf16, #tpu.memory_space<vmem>>, vector<16x128xbf16>
    %c112 = arith.constant 112 : index
    %c0_48 = arith.constant 0 : index
    %69 = vector.load %arg13[%c112, %c0_48] : memref<144x128xbf16, #tpu.memory_space<vmem>>, vector<16x128xbf16>
    tpu.vector_store %arg13[%c112, %c0_48], %68 {strides = array<i32>} : memref<144x128xbf16, #tpu.memory_space<vmem>>, vector<16x128xbf16>,
    %c0_49 = arith.constant 0 : index
    %c33_50 = arith.constant 33 : index
    %70 = vector.load %arg11[%c0_49, %c33_50] : memref<16x192xbf16, #tpu.memory_space<vmem>>, vector<16x128xbf16>
    %c0_i32_51 = arith.constant 0 : i32
    %71 = arith.sitofp %c0_i32_51 : i32 to bf16
    %72 = vector.broadcast %71 : bf16 to vector<16x128xbf16>
    %73 = arith.select %38, %70, %72 : vector<16x128xi1>, vector<16x128xbf16>
    %c128 = arith.constant 128 : index
    %c0_52 = arith.constant 0 : index
    %74 = vector.load %arg13[%c128, %c0_52] : memref<144x128xbf16, #tpu.memory_space<vmem>>, vector<16x128xbf16>
    tpu.vector_store %arg13[%c128, %c0_52], %73 {strides = array<i32>} : memref<144x128xbf16, #tpu.memory_space<vmem>>, vector<16x128xbf16>,
    %c0_53 = arith.constant 0 : index
    %c0_54 = arith.constant 0 : index
    %75 = vector.load %arg3[%c0_53, %c0_54] : memref<16x144xbf16, #tpu.memory_space<vmem>>, vector<16x144xbf16>
    %c0_55 = arith.constant 0 : index
    %c0_56 = arith.constant 0 : index
    %76 = vector.load %arg13[%c0_55, %c0_56] : memref<144x128xbf16, #tpu.memory_space<vmem>>, vector<144x128xbf16>
    %cst_57 = arith.constant dense<0.000000e+00> : vector<16x128xf32>
    %77 = tpu.matmul %75, %76, %cst_57 {dimension_numbers = #tpu.dot_dimension_numbers<[1], [0], [0], [1], [0, 0, 1, 1], [], []>} : vector<16x144xbf16>, vector<144x128xbf16>, vector<16x128xf32> -> vector<16x128xf32>
    %c0_58 = arith.constant 0 : index
    %c0_59 = arith.constant 0 : index
    %78 = vector.load %arg4[%c0_58, %c0_59] : memref<16x1xf32, #tpu.memory_space<vmem>>, vector<16x1xf32>
    %79 = vector.broadcast %78 : vector<16x1xf32> to vector<16x128xf32>
    %80 = arith.addf %77, %79 : vector<16x128xf32>
    %cst_60 = arith.constant 0.000000e+00 : f32
    %81 = vector.broadcast %cst_60 : f32 to vector<16x128xf32>
    %82 = arith.maximumf %80, %81 : vector<16x128xf32>
    %cst_61 = arith.constant 0.000000e+00 : bf16
    %83 = vector.broadcast %cst_61 : bf16 to vector<16x32xbf16>
    %c0_62 = arith.constant 0 : index
    %c0_63 = arith.constant 0 : index
    %84 = vector.load %arg12[%c0_62, %c0_63] : memref<16x192xbf16, #tpu.memory_space<vmem>>, vector<16x32xbf16>
    tpu.vector_store %arg12[%c0_62, %c0_63], %83 {strides = array<i32>} : memref<16x192xbf16, #tpu.memory_space<vmem>>, vector<16x32xbf16>,
    %cst_64 = arith.constant 0.000000e+00 : bf16
    %85 = vector.broadcast %cst_64 : bf16 to vector<16x32xbf16>
    %c0_65 = arith.constant 0 : index
    %c160_66 = arith.constant 160 : index
    %86 = vector.load %arg12[%c0_65, %c160_66] : memref<16x192xbf16, #tpu.memory_space<vmem>>, vector<16x32xbf16>
    tpu.vector_store %arg12[%c0_65, %c160_66], %85 {strides = array<i32>} : memref<16x192xbf16, #tpu.memory_space<vmem>>, vector<16x32xbf16>,
    %87 = arith.truncf %82 : vector<16x128xf32> to vector<16x128xbf16>
    %c0_67 = arith.constant 0 : index
    %c32_68 = arith.constant 32 : index
    %88 = vector.load %arg12[%c0_67, %c32_68] : memref<16x192xbf16, #tpu.memory_space<vmem>>, vector<16x128xbf16>
    tpu.vector_store %arg12[%c0_67, %c32_68], %87 {strides = array<i32>} : memref<16x192xbf16, #tpu.memory_space<vmem>>, vector<16x128xbf16>,
    %89 = vector.shape_cast %18 : vector<1x128xi1> to vector<1x128xi1>
    %90 = vector.broadcast %89 : vector<1x128xi1> to vector<16x128xi1>
    %91 = vector.shape_cast %20 : vector<1x128xi1> to vector<1x128xi1>
    %92 = vector.broadcast %91 : vector<1x128xi1> to vector<16x128xi1>
    %c0_69 = arith.constant 0 : index
    %c15_70 = arith.constant 15 : index
    %93 = vector.load %arg12[%c0_69, %c15_70] : memref<16x192xbf16, #tpu.memory_space<vmem>>, vector<16x128xbf16>
    %c0_i32_71 = arith.constant 0 : i32
    %94 = arith.sitofp %c0_i32_71 : i32 to bf16
    %95 = vector.broadcast %94 : bf16 to vector<16x128xbf16>
    %96 = arith.select %90, %93, %95 : vector<16x128xi1>, vector<16x128xbf16>
    %c0_72 = arith.constant 0 : index
    %c0_73 = arith.constant 0 : index
    %97 = vector.load %arg14[%c0_72, %c0_73] : memref<144x128xbf16, #tpu.memory_space<vmem>>, vector<16x128xbf16>
    tpu.vector_store %arg14[%c0_72, %c0_73], %96 {strides = array<i32>} : memref<144x128xbf16, #tpu.memory_space<vmem>>, vector<16x128xbf16>,
    %c0_74 = arith.constant 0 : index
    %c16_75 = arith.constant 16 : index
    %98 = vector.load %arg12[%c0_74, %c16_75] : memref<16x192xbf16, #tpu.memory_space<vmem>>, vector<16x128xbf16>
    %c16_76 = arith.constant 16 : index
    %c0_77 = arith.constant 0 : index
    %99 = vector.load %arg14[%c16_76, %c0_77] : memref<144x128xbf16, #tpu.memory_space<vmem>>, vector<16x128xbf16>
    tpu.vector_store %arg14[%c16_76, %c0_77], %98 {strides = array<i32>} : memref<144x128xbf16, #tpu.memory_space<vmem>>, vector<16x128xbf16>,
    %c0_78 = arith.constant 0 : index
    %c17_79 = arith.constant 17 : index
    %100 = vector.load %arg12[%c0_78, %c17_79] : memref<16x192xbf16, #tpu.memory_space<vmem>>, vector<16x128xbf16>
    %c0_i32_80 = arith.constant 0 : i32
    %101 = arith.sitofp %c0_i32_80 : i32 to bf16
    %102 = vector.broadcast %101 : bf16 to vector<16x128xbf16>
    %103 = arith.select %92, %100, %102 : vector<16x128xi1>, vector<16x128xbf16>
    %c32_81 = arith.constant 32 : index
    %c0_82 = arith.constant 0 : index
    %104 = vector.load %arg14[%c32_81, %c0_82] : memref<144x128xbf16, #tpu.memory_space<vmem>>, vector<16x128xbf16>
    tpu.vector_store %arg14[%c32_81, %c0_82], %103 {strides = array<i32>} : memref<144x128xbf16, #tpu.memory_space<vmem>>, vector<16x128xbf16>,
    %c0_83 = arith.constant 0 : index
    %c31_84 = arith.constant 31 : index
    %105 = vector.load %arg12[%c0_83, %c31_84] : memref<16x192xbf16, #tpu.memory_space<vmem>>, vector<16x128xbf16>
    %c0_i32_85 = arith.constant 0 : i32
    %106 = arith.sitofp %c0_i32_85 : i32 to bf16
    %107 = vector.broadcast %106 : bf16 to vector<16x128xbf16>
    %108 = arith.select %90, %105, %107 : vector<16x128xi1>, vector<16x128xbf16>
    %c48_86 = arith.constant 48 : index
    %c0_87 = arith.constant 0 : index
    %109 = vector.load %arg14[%c48_86, %c0_87] : memref<144x128xbf16, #tpu.memory_space<vmem>>, vector<16x128xbf16>
    tpu.vector_store %arg14[%c48_86, %c0_87], %108 {strides = array<i32>} : memref<144x128xbf16, #tpu.memory_space<vmem>>, vector<16x128xbf16>,
    %c0_88 = arith.constant 0 : index
    %c32_89 = arith.constant 32 : index
    %110 = vector.load %arg12[%c0_88, %c32_89] : memref<16x192xbf16, #tpu.memory_space<vmem>>, vector<16x128xbf16>
    %c64_90 = arith.constant 64 : index
    %c0_91 = arith.constant 0 : index
    %111 = vector.load %arg14[%c64_90, %c0_91] : memref<144x128xbf16, #tpu.memory_space<vmem>>, vector<16x128xbf16>
    tpu.vector_store %arg14[%c64_90, %c0_91], %110 {strides = array<i32>} : memref<144x128xbf16, #tpu.memory_space<vmem>>, vector<16x128xbf16>,
    %c0_92 = arith.constant 0 : index
    %c33_93 = arith.constant 33 : index
    %112 = vector.load %arg12[%c0_92, %c33_93] : memref<16x192xbf16, #tpu.memory_space<vmem>>, vector<16x128xbf16>
    %c0_i32_94 = arith.constant 0 : i32
    %113 = arith.sitofp %c0_i32_94 : i32 to bf16
    %114 = vector.broadcast %113 : bf16 to vector<16x128xbf16>
    %115 = arith.select %92, %112, %114 : vector<16x128xi1>, vector<16x128xbf16>
    %c80_95 = arith.constant 80 : index
    %c0_96 = arith.constant 0 : index
    %116 = vector.load %arg14[%c80_95, %c0_96] : memref<144x128xbf16, #tpu.memory_space<vmem>>, vector<16x128xbf16>
    tpu.vector_store %arg14[%c80_95, %c0_96], %115 {strides = array<i32>} : memref<144x128xbf16, #tpu.memory_space<vmem>>, vector<16x128xbf16>,
    %c0_97 = arith.constant 0 : index
    %c47 = arith.constant 47 : index
    %117 = vector.load %arg12[%c0_97, %c47] : memref<16x192xbf16, #tpu.memory_space<vmem>>, vector<16x128xbf16>
    %c0_i32_98 = arith.constant 0 : i32
    %118 = arith.sitofp %c0_i32_98 : i32 to bf16
    %119 = vector.broadcast %118 : bf16 to vector<16x128xbf16>
    %120 = arith.select %90, %117, %119 : vector<16x128xi1>, vector<16x128xbf16>
    %c96_99 = arith.constant 96 : index
    %c0_100 = arith.constant 0 : index
    %121 = vector.load %arg14[%c96_99, %c0_100] : memref<144x128xbf16, #tpu.memory_space<vmem>>, vector<16x128xbf16>
    tpu.vector_store %arg14[%c96_99, %c0_100], %120 {strides = array<i32>} : memref<144x128xbf16, #tpu.memory_space<vmem>>, vector<16x128xbf16>,
    %c0_101 = arith.constant 0 : index
    %c48_102 = arith.constant 48 : index
    %122 = vector.load %arg12[%c0_101, %c48_102] : memref<16x192xbf16, #tpu.memory_space<vmem>>, vector<16x128xbf16>
    %c112_103 = arith.constant 112 : index
    %c0_104 = arith.constant 0 : index
    %123 = vector.load %arg14[%c112_103, %c0_104] : memref<144x128xbf16, #tpu.memory_space<vmem>>, vector<16x128xbf16>
    tpu.vector_store %arg14[%c112_103, %c0_104], %122 {strides = array<i32>} : memref<144x128xbf16, #tpu.memory_space<vmem>>, vector<16x128xbf16>,
    %c0_105 = arith.constant 0 : index
    %c49 = arith.constant 49 : index
    %124 = vector.load %arg12[%c0_105, %c49] : memref<16x192xbf16, #tpu.memory_space<vmem>>, vector<16x128xbf16>
    %c0_i32_106 = arith.constant 0 : i32
    %125 = arith.sitofp %c0_i32_106 : i32 to bf16
    %126 = vector.broadcast %125 : bf16 to vector<16x128xbf16>
    %127 = arith.select %92, %124, %126 : vector<16x128xi1>, vector<16x128xbf16>
    %c128_107 = arith.constant 128 : index
    %c0_108 = arith.constant 0 : index
    %128 = vector.load %arg14[%c128_107, %c0_108] : memref<144x128xbf16, #tpu.memory_space<vmem>>, vector<16x128xbf16>
    tpu.vector_store %arg14[%c128_107, %c0_108], %127 {strides = array<i32>} : memref<144x128xbf16, #tpu.memory_space<vmem>>, vector<16x128xbf16>,
    %c0_109 = arith.constant 0 : index
    %c0_110 = arith.constant 0 : index
    %129 = vector.load %arg5[%c0_109, %c0_110] : memref<16x144xbf16, #tpu.memory_space<vmem>>, vector<16x144xbf16>
    %c0_111 = arith.constant 0 : index
    %c0_112 = arith.constant 0 : index
    %130 = vector.load %arg14[%c0_111, %c0_112] : memref<144x128xbf16, #tpu.memory_space<vmem>>, vector<144x128xbf16>
    %cst_113 = arith.constant dense<0.000000e+00> : vector<16x128xf32>
    %131 = tpu.matmul %129, %130, %cst_113 {dimension_numbers = #tpu.dot_dimension_numbers<[1], [0], [0], [1], [0, 0, 1, 1], [], []>} : vector<16x144xbf16>, vector<144x128xbf16>, vector<16x128xf32> -> vector<16x128xf32>
    %c0_114 = arith.constant 0 : index
    %c0_115 = arith.constant 0 : index
    %132 = vector.load %arg6[%c0_114, %c0_115] : memref<16x1xf32, #tpu.memory_space<vmem>>, vector<16x1xf32>
    %133 = vector.broadcast %132 : vector<16x1xf32> to vector<16x128xf32>
    %134 = arith.addf %131, %133 : vector<16x128xf32>
    %c0_116 = arith.constant 0 : index
    %c0_117 = arith.constant 0 : index
    %c0_118 = arith.constant 0 : index
    %135 = vector.load %arg1[%c0_116, %c0_117, %c0_118] : memref<1x16x128xbf16, #tpu.memory_space<vmem>>, vector<1x16x128xbf16>
    %136 = vector.shape_cast %135 : vector<1x16x128xbf16> to vector<16x128xbf16>
    %c0_119 = arith.constant 0 : index
    %c0_120 = arith.constant 0 : index
    %137 = vector.load %arg7[%c0_119, %c0_120] : memref<16x16xbf16, #tpu.memory_space<vmem>>, vector<16x16xbf16>
    %cst_121 = arith.constant dense<0.000000e+00> : vector<16x128xf32>
    %138 = tpu.matmul %137, %136, %cst_121 {dimension_numbers = #tpu.dot_dimension_numbers<[1], [0], [0], [1], [0, 0, 1, 1], [], []>} : vector<16x16xbf16>, vector<16x128xbf16>, vector<16x128xf32> -> vector<16x128xf32>
    %c0_122 = arith.constant 0 : index
    %c0_123 = arith.constant 0 : index
    %139 = vector.load %arg8[%c0_122, %c0_123] : memref<16x1xf32, #tpu.memory_space<vmem>>, vector<16x1xf32>
    %140 = vector.broadcast %139 : vector<16x1xf32> to vector<16x128xf32>
    %141 = arith.addf %138, %140 : vector<16x128xf32>
    %142 = arith.addf %134, %141 : vector<16x128xf32>
    %cst_124 = arith.constant 0.000000e+00 : f32
    %143 = vector.broadcast %cst_124 : f32 to vector<16x128xf32>
    %144 = arith.maximumf %142, %143 : vector<16x128xf32>
    %145 = arith.truncf %144 : vector<16x128xf32> to vector<16x128xbf16>
    %c0_125 = arith.constant 0 : index
    %c0_126 = arith.constant 0 : index
    %c0_127 = arith.constant 0 : index
    %146 = vector.load %arg9[%c0_125, %c0_126, %c0_127] : memref<1x16x128xbf16, #tpu.memory_space<vmem>>, vector<1x16x128xbf16>
    %147 = vector.shape_cast %146 : vector<1x16x128xbf16> to vector<16x128xbf16>
    %148 = vector.shape_cast %145 : vector<16x128xbf16> to vector<1x16x128xbf16>
    tpu.vector_store %arg9[%c0_125, %c0_126, %c0_127], %148 {strides = array<i32>} : memref<1x16x128xbf16, #tpu.memory_space<vmem>>, vector<1x16x128xbf16>,
    return
  }
  func.func @transform_0(%arg0: i32) -> (i32, i32, i32) {
    %c0_i32 = arith.constant 0 : i32
    %c0_i32_0 = arith.constant 0 : i32
    %c0_i32_1 = arith.constant 0 : i32
    return %arg0, %c0_i32, %c0_i32_0 : i32, i32, i32
  }
  func.func @transform_1(%arg0: i32) -> (i32, i32, i32) {
    %c0_i32 = arith.constant 0 : i32
    %c0_i32_0 = arith.constant 0 : i32
    %c0_i32_1 = arith.constant 0 : i32
    return %arg0, %c0_i32, %c0_i32_0 : i32, i32, i32
  }
  func.func @transform_2(%arg0: i32) -> (i32, i32) {
    %c0_i32 = arith.constant 0 : i32
    %c0_i32_0 = arith.constant 0 : i32
    %c0_i32_1 = arith.constant 0 : i32
    return %c0_i32, %c0_i32_0 : i32, i32
  }
  func.func @transform_3(%arg0: i32) -> (i32, i32) {
    %c0_i32 = arith.constant 0 : i32
    %c0_i32_0 = arith.constant 0 : i32
    %c0_i32_1 = arith.constant 0 : i32
    return %c0_i32, %c0_i32_0 : i32, i32
  }
  func.func @transform_4(%arg0: i32) -> (i32, i32) {
    %c0_i32 = arith.constant 0 : i32
    %c0_i32_0 = arith.constant 0 : i32
    %c0_i32_1 = arith.constant 0 : i32
    return %c0_i32, %c0_i32_0 : i32, i32
  }
  func.func @transform_5(%arg0: i32) -> (i32, i32) {
    %c0_i32 = arith.constant 0 : i32
    %c0_i32_0 = arith.constant 0 : i32
    %c0_i32_1 = arith.constant 0 : i32
    return %c0_i32, %c0_i32_0 : i32, i32
  }
  func.func @transform_6(%arg0: i32) -> (i32, i32) {
    %c0_i32 = arith.constant 0 : i32
    %c0_i32_0 = arith.constant 0 : i32
    %c0_i32_1 = arith.constant 0 : i32
    return %c0_i32, %c0_i32_0 : i32, i32
  }
  func.func @transform_7(%arg0: i32) -> (i32, i32) {
    %c0_i32 = arith.constant 0 : i32
    %c0_i32_0 = arith.constant 0 : i32
    %c0_i32_1 = arith.constant 0 : i32
    return %c0_i32, %c0_i32_0 : i32, i32
  }
  func.func @transform_8(%arg0: i32) -> (i32, i32, i32) {
    %c0_i32 = arith.constant 0 : i32
    %c0_i32_0 = arith.constant 0 : i32
    %c0_i32_1 = arith.constant 0 : i32
    return %arg0, %c0_i32, %c0_i32_0 : i32, i32, i32
  }
}

</mosaic_0001>

<llo_original>
// kernel: basic_res_block.1
$region0: #{basic_res_block.1}
  #allocation0 [shape = 'u32[]', space=smem, size = 0x4, offset = 0x4, fixed_abs, tag = 'smem constant byte address 0x4 - core index']
  #allocation1 [shape = 'u32[144,128]{1,0:T(1,128)}', space=vmem, size = 0x12000, scoped, tag = 'internal scratch']
  #allocation2 [shape = 'bf16[16,192]{1,0:T(16,128)(2,1)}', space=vmem, size = 0x2000, scoped, tag = 'scratch operand']
  #allocation3 [shape = 'bf16[16,192]{1,0:T(16,128)(2,1)}', space=vmem, size = 0x2000, scoped, tag = 'scratch operand']
  #allocation4 [shape = 'bf16[16,192]{1,0:T(16,128)(2,1)}', space=vmem, size = 0x2000, scoped, tag = 'scratch operand']
  #allocation5 [shape = 'bf16[144,128]{1,0:T(16,128)(2,1)}', space=vmem, size = 0x9000, scoped, tag = 'scratch operand']
  #allocation6 [shape = 'bf16[144,128]{1,0:T(16,128)(2,1)}', space=vmem, size = 0x9000, scoped, tag = 'scratch operand']
  %s0 = inlined_call_operand.vmem [shape: bf16[2,16,128], index: 0, kind: input, shape index: {}]
  %s1 = inlined_call_operand.vmem [shape: bf16[2,16,128], index: 1, kind: input, shape index: {}]
  %s2 = inlined_call_operand.vmem [shape: bf16[16,144], index: 2, kind: input, shape index: {}]
  %s3 = inlined_call_operand.vmem [shape: f32[16,1], index: 3, kind: input, shape index: {}]
  %s4 = inlined_call_operand.vmem [shape: bf16[16,144], index: 4, kind: input, shape index: {}]
  %s5 = inlined_call_operand.vmem [shape: f32[16,1], index: 5, kind: input, shape index: {}]
  %s6 = inlined_call_operand.vmem [shape: bf16[16,16], index: 6, kind: input, shape index: {}]
  %s7 = inlined_call_operand.vmem [shape: f32[16,1], index: 7, kind: input, shape index: {}]
  %s8 = inlined_call_operand.vmem [shape: bf16[2,16,128], index: 8, kind: output, shape index: {}]
  %s9 = sld [smem:[#allocation0]]
  $region65: #{basic_res_block.1} parent=0
    _
  %s11 = ssub.s32 1, %s9
  %s12 = scalar_select 0, %s11, %s9
  loop: start=0, step=1, limit=4
  $region2: #{basic_res_block.1} parent=0 // loop_pre_header
    _
  $region3: #{basic_res_block.1} parent=0 // loop_header
    %s14 = sphi 0, %s18
    %p15 = scmp.ge.s32.totalorder %s14, 4
    %s24 = sphi 0, %s26
    %s27 = sphi 0, %s24
    %s28 = sphi 0, %s27
    %s44 = sphi 0, %s28
    %s50 = sphi 0, %s52
    %s53 = sphi 0, %s50
    %s54 = sphi 0, %s53
    %s70 = sphi 0, %s54
    %s74 = sphi 0, %s74
    %s76 = sphi 0, %s74
    %s77 = sphi 0, %s76
    %s91 = sphi 0, %s77
    %s95 = sphi 0, %s95
    %s97 = sphi 0, %s95
    %s98 = sphi 0, %s97
    %s112 = sphi 0, %s98
    %s116 = sphi 0, %s116
    %s118 = sphi 0, %s116
    %s119 = sphi 0, %s118
    %s133 = sphi 0, %s119
    %s137 = sphi 0, %s137
    %s139 = sphi 0, %s137
    %s140 = sphi 0, %s139
    %s154 = sphi 0, %s140
    %s158 = sphi 0, %s158
    %s160 = sphi 0, %s158
    %s161 = sphi 0, %s160
    %s175 = sphi 0, %s161
    %s179 = sphi 0, %s179
    %s181 = sphi 0, %s179
    %s182 = sphi 0, %s181
    %s196 = sphi 0, %s182
    %s202 = sphi 0, %s204
    %s205 = sphi 0, %s202
    %s206 = sphi 0, %s205
    %s222 = sphi 0, %s206
  $region4: #{basic_res_block.1} parent=0 // loop_header_branch
    %17 = sbr.rel (%p15) target = $region8
  $region5: #{basic_res_block.1} parent=0 // loop_body
    %s19 = ssub.s32 %s14, 1
    %s20 = ssub.s32 %s14, 2
    %s21 = sadd.s32 %s14, 1
    %s22 = ssub.s32 %s14, %s21
    %p23 = scmp.eq.s32.totalorder %s22, 0
    %s25 = sadd.s32 %s24, 1
    %s26 = scalar_select %p23, %s24, %s25
    %p29 = pneg %p23
    %p30 = scmp.eq.s32.totalorder %s14, 1
    %p31 = por %p29, %p30
    %p32 = scmp.ne.s32.totalorder %s24, %s27
    %p33 = scmp.eq.s32.totalorder %s14, 0
    %p34 = por %p32, %p33
    %p35 = scmp.ne.s32.totalorder %s24, %s27
    %p36 = scmp.eq.s32.totalorder %s19, 1
    %p37 = por %p35, %p36
    %p38 = scmp.ne.s32.totalorder %s27, %s28
    %p39 = scmp.eq.s32.totalorder %s19, 0
    %p40 = por %p38, %p39
    %p41 = scmp.ne.s32.totalorder %s27, %s28
    %p42 = scmp.eq.s32.totalorder %s20, 1
    %p43 = por %p41, %p42
    %p45 = scmp.ne.s32.totalorder %s28, %s44
    %p46 = scmp.eq.s32.totalorder %s20, 0
    %p47 = por %p45, %p46
    %s48 = ssub.s32 %s14, %s21
    %p49 = scmp.eq.s32.totalorder %s48, 0
    %s51 = sadd.s32 %s50, 1
    %s52 = scalar_select %p49, %s50, %s51
    %p55 = pneg %p49
    %p56 = scmp.eq.s32.totalorder %s14, 1
    %p57 = por %p55, %p56
    %p58 = scmp.ne.s32.totalorder %s50, %s53
    %p59 = scmp.eq.s32.totalorder %s14, 0
    %p60 = por %p58, %p59
    %p61 = scmp.ne.s32.totalorder %s50, %s53
    %p62 = scmp.eq.s32.totalorder %s19, 1
    %p63 = por %p61, %p62
    %p64 = scmp.ne.s32.totalorder %s53, %s54
    %p65 = scmp.eq.s32.totalorder %s19, 0
    %p66 = por %p64, %p65
    %p67 = scmp.ne.s32.totalorder %s53, %s54
    %p68 = scmp.eq.s32.totalorder %s20, 1
    %p69 = por %p67, %p68
    %p71 = scmp.ne.s32.totalorder %s54, %s70
    %p72 = scmp.eq.s32.totalorder %s20, 0
    %p73 = por %p71, %p72
    %s75 = sadd.s32 %s74, 1
    %p78 = scmp.eq.s32.totalorder %s14, 1
    %p79 = scmp.ne.s32.totalorder %s74, %s76
    %p80 = scmp.eq.s32.totalorder %s14, 0
    %p81 = por %p79, %p80
    %p82 = scmp.ne.s32.totalorder %s74, %s76
    %p83 = scmp.eq.s32.totalorder %s19, 1
    %p84 = por %p82, %p83
    %p85 = scmp.ne.s32.totalorder %s76, %s77
    %p86 = scmp.eq.s32.totalorder %s19, 0
    %p87 = por %p85, %p86
    %p88 = scmp.ne.s32.totalorder %s76, %s77
    %p89 = scmp.eq.s32.totalorder %s20, 1
    %p90 = por %p88, %p89
    %p92 = scmp.ne.s32.totalorder %s77, %s91
    %p93 = scmp.eq.s32.totalorder %s20, 0
    %p94 = por %p92, %p93
    %s96 = sadd.s32 %s95, 1
    %p99 = scmp.eq.s32.totalorder %s14, 1
    %p100 = scmp.ne.s32.totalorder %s95, %s97
    %p101 = scmp.eq.s32.totalorder %s14, 0
    %p102 = por %p100, %p101
    %p103 = scmp.ne.s32.totalorder %s95, %s97
    %p104 = scmp.eq.s32.totalorder %s19, 1
    %p105 = por %p103, %p104
    %p106 = scmp.ne.s32.totalorder %s97, %s98
    %p107 = scmp.eq.s32.totalorder %s19, 0
    %p108 = por %p106, %p107
    %p109 = scmp.ne.s32.totalorder %s97, %s98
    %p110 = scmp.eq.s32.totalorder %s20, 1
    %p111 = por %p109, %p110
    %p113 = scmp.ne.s32.totalorder %s98, %s112
    %p114 = scmp.eq.s32.totalorder %s20, 0
    %p115 = por %p113, %p114
    %s117 = sadd.s32 %s116, 1
    %p120 = scmp.eq.s32.totalorder %s14, 1
    %p121 = scmp.ne.s32.totalorder %s116, %s118
    %p122 = scmp.eq.s32.totalorder %s14, 0
    %p123 = por %p121, %p122
    %p124 = scmp.ne.s32.totalorder %s116, %s118
    %p125 = scmp.eq.s32.totalorder %s19, 1
    %p126 = por %p124, %p125
    %p127 = scmp.ne.s32.totalorder %s118, %s119
    %p128 = scmp.eq.s32.totalorder %s19, 0
    %p129 = por %p127, %p128
    %p130 = scmp.ne.s32.totalorder %s118, %s119
    %p131 = scmp.eq.s32.totalorder %s20, 1
    %p132 = por %p130, %p131
    %p134 = scmp.ne.s32.totalorder %s119, %s133
    %p135 = scmp.eq.s32.totalorder %s20, 0
    %p136 = por %p134, %p135
    %s138 = sadd.s32 %s137, 1
    %p141 = scmp.eq.s32.totalorder %s14, 1
    %p142 = scmp.ne.s32.totalorder %s137, %s139
    %p143 = scmp.eq.s32.totalorder %s14, 0
    %p144 = por %p142, %p143
    %p145 = scmp.ne.s32.totalorder %s137, %s139
    %p146 = scmp.eq.s32.totalorder %s19, 1
    %p147 = por %p145, %p146
    %p148 = scmp.ne.s32.totalorder %s139, %s140
    %p149 = scmp.eq.s32.totalorder %s19, 0
    %p150 = por %p148, %p149
    %p151 = scmp.ne.s32.totalorder %s139, %s140
    %p152 = scmp.eq.s32.totalorder %s20, 1
    %p153 = por %p151, %p152
    %p155 = scmp.ne.s32.totalorder %s140, %s154
    %p156 = scmp.eq.s32.totalorder %s20, 0
    %p157 = por %p155, %p156
    %s159 = sadd.s32 %s158, 1
    %p162 = scmp.eq.s32.totalorder %s14, 1
    %p163 = scmp.ne.s32.totalorder %s158, %s160
    %p164 = scmp.eq.s32.totalorder %s14, 0
    %p165 = por %p163, %p164
    %p166 = scmp.ne.s32.totalorder %s158, %s160
    %p167 = scmp.eq.s32.totalorder %s19, 1
    %p168 = por %p166, %p167
    %p169 = scmp.ne.s32.totalorder %s160, %s161
    %p170 = scmp.eq.s32.totalorder %s19, 0
    %p171 = por %p169, %p170
    %p172 = scmp.ne.s32.totalorder %s160, %s161
    %p173 = scmp.eq.s32.totalorder %s20, 1
    %p174 = por %p172, %p173
    %p176 = scmp.ne.s32.totalorder %s161, %s175
    %p177 = scmp.eq.s32.totalorder %s20, 0
    %p178 = por %p176, %p177
    %s180 = sadd.s32 %s179, 1
    %p183 = scmp.eq.s32.totalorder %s14, 1
    %p184 = scmp.ne.s32.totalorder %s179, %s181
    %p185 = scmp.eq.s32.totalorder %s14, 0
    %p186 = por %p184, %p185
    %p187 = scmp.ne.s32.totalorder %s179, %s181
    %p188 = scmp.eq.s32.totalorder %s19, 1
    %p189 = por %p187, %p188
    %p190 = scmp.ne.s32.totalorder %s181, %s182
    %p191 = scmp.eq.s32.totalorder %s19, 0
    %p192 = por %p190, %p191
    %p193 = scmp.ne.s32.totalorder %s181, %s182
    %p194 = scmp.eq.s32.totalorder %s20, 1
    %p195 = por %p193, %p194
    %p197 = scmp.ne.s32.totalorder %s182, %s196
    %p198 = scmp.eq.s32.totalorder %s20, 0
    %p199 = por %p197, %p198
    %s200 = ssub.s32 %s14, %s21
    %p201 = scmp.eq.s32.totalorder %s200, 0
    %s203 = sadd.s32 %s202, 1
    %s204 = scalar_select %p201, %s202, %s203
    %p207 = pneg %p201
    %p208 = scmp.eq.s32.totalorder %s14, 1
    %p209 = por %p207, %p208
    %p210 = scmp.ne.s32.totalorder %s202, %s205
    %p211 = scmp.eq.s32.totalorder %s14, 0
    %p212 = por %p210, %p211
    %p213 = scmp.ne.s32.totalorder %s202, %s205
    %p214 = scmp.eq.s32.totalorder %s19, 1
    %p215 = por %p213, %p214
    %p216 = scmp.ne.s32.totalorder %s205, %s206
    %p217 = scmp.eq.s32.totalorder %s19, 0
    %p218 = por %p216, %p217
    %p219 = scmp.ne.s32.totalorder %s205, %s206
    %p220 = scmp.eq.s32.totalorder %s20, 1
    %p221 = por %p219, %p220
    %p223 = scmp.ne.s32.totalorder %s206, %s222
    %p224 = scmp.eq.s32.totalorder %s20, 0
    %p225 = por %p223, %p224
    %p226 = scmp.le.s32.totalorder 1, %s14
    %p227 = scmp.lt.s32.totalorder %s14, 3
    %p228 = pnand %p226, %p227
    %p229 = pneg %p228
    // Predicated region
    $region9: #{basic_res_block.1} parent=5 // pred_check
      _
    $region10: #{basic_res_block.1} parent=5 // pred_check_branch
      %231 = sbr.rel (%p228) target = $region12
    $region11: #{basic_res_block.1} parent=5 // pred_region
      %s232 = ssub.s32 %s14, 1
      // Predicated region
      $region13: #{basic_res_block.1} parent=11 // pred_check
        %p233 = pneg %p87
      $region14: #{basic_res_block.1} parent=11 // pred_check_branch
        %235 = sbr.rel (%p233) target = $region16
      $region15: #{basic_res_block.1} parent=11 // pred_region
        _
      $region16: #{basic_res_block.1} parent=11 // pred_fallthru
        _
      // Predicated region
      $region17: #{basic_res_block.1} parent=11 // pred_check
        %p236 = pneg %p108
      $region18: #{basic_res_block.1} parent=11 // pred_check_branch
        %238 = sbr.rel (%p236) target = $region20
      $region19: #{basic_res_block.1} parent=11 // pred_region
        _
      $region20: #{basic_res_block.1} parent=11 // pred_fallthru
        _
      // Predicated region
      $region21: #{basic_res_block.1} parent=11 // pred_check
        %p239 = pneg %p129
      $region22: #{basic_res_block.1} parent=11 // pred_check_branch
        %241 = sbr.rel (%p239) target = $region24
      $region23: #{basic_res_block.1} parent=11 // pred_region
        _
      $region24: #{basic_res_block.1} parent=11 // pred_fallthru
        _
      // Predicated region
      $region25: #{basic_res_block.1} parent=11 // pred_check
        %p242 = pneg %p150
      $region26: #{basic_res_block.1} parent=11 // pred_check_branch
        %244 = sbr.rel (%p242) target = $region28
      $region27: #{basic_res_block.1} parent=11 // pred_region
        _
      $region28: #{basic_res_block.1} parent=11 // pred_fallthru
        _
      // Predicated region
      $region29: #{basic_res_block.1} parent=11 // pred_check
        %p245 = pneg %p171
      $region30: #{basic_res_block.1} parent=11 // pred_check_branch
        %247 = sbr.rel (%p245) target = $region32
      $region31: #{basic_res_block.1} parent=11 // pred_region
        _
      $region32: #{basic_res_block.1} parent=11 // pred_fallthru
        _
      // Predicated region
      $region33: #{basic_res_block.1} parent=11 // pred_check
        %p248 = pneg %p192
      $region34: #{basic_res_block.1} parent=11 // pred_check_branch
        %250 = sbr.rel (%p248) target = $region36
      $region35: #{basic_res_block.1} parent=11 // pred_region
        _
      $region36: #{basic_res_block.1} parent=11 // pred_fallthru
        _
    $region12: #{basic_res_block.1} parent=5 // pred_fallthru
      _
    %p251 = scmp.lt.s32.totalorder %s14, 2
    // Predicated region
    $region37: #{basic_res_block.1} parent=5 // pred_check
      %p252 = pneg %p251
    $region38: #{basic_res_block.1} parent=5 // pred_check_branch
      %254 = sbr.rel (%p252) target = $region40
    $region39: #{basic_res_block.1} parent=5 // pred_region
      // Predicated region
      $region41: #{basic_res_block.1} parent=39 // pred_check
        %p255 = pneg %p34
      $region42: #{basic_res_block.1} parent=39 // pred_check_branch
        %257 = sbr.rel (%p255) target = $region44
      $region43: #{basic_res_block.1} parent=39 // pred_region
        %p258 = scmp.lt.s32.totalorder %s14, 1
        %s259 = scalar_select %p258, %s14, 1
        %s260 = smul.addr %s259, 2
        %s261 = smul.addr %s260, 4
        %s262 = scalar_lea.vmem %s0, %s261
      $region44: #{basic_res_block.1} parent=39 // pred_fallthru
        _
      // Predicated region
      $region45: #{basic_res_block.1} parent=39 // pred_check
        %p263 = pneg %p60
      $region46: #{basic_res_block.1} parent=39 // pred_check_branch
        %265 = sbr.rel (%p263) target = $region48
      $region47: #{basic_res_block.1} parent=39 // pred_region
        %p266 = scmp.lt.s32.totalorder %s14, 1
        %s267 = scalar_select %p266, %s14, 1
        %s268 = smul.addr %s267, 2
        %s269 = smul.addr %s268, 4
        %s270 = scalar_lea.vmem %s1, %s269
      $region48: #{basic_res_block.1} parent=39 // pred_fallthru
        _
    $region40: #{basic_res_block.1} parent=5 // pred_fallthru
      _
    %p271 = scmp.le.s32.totalorder 1, %s14
    %p272 = scmp.lt.s32.totalorder %s14, 3
    %p273 = pnand %p271, %p272
    %p274 = pneg %p273
    // Predicated region
    $region49: #{basic_res_block.1} parent=5 // pred_check
      _
    $region50: #{basic_res_block.1} parent=5 // pred_check_branch
      %276 = sbr.rel (%p273) target = $region52
    $region51: #{basic_res_block.1} parent=5 // pred_region
      %s277 = ssub.s32 %s14, 1
      %p278 = scmp.lt.s32.totalorder %s19, 1
      %s279 = scalar_select %p278, %s19, 1
      %s280 = smul.addr %s279, 2
      %s281 = smul.addr %s280, 4
      %s282 = scalar_lea.vmem %s0, %s281
      %p283 = pneg %p40
      %p284 = pneg %p37
      %p285 = scmp.lt.s32.totalorder %s19, 1
      %s286 = scalar_select %p285, %s19, 1
      %s287 = smul.addr %s286, 2
      %s288 = smul.addr %s287, 4
      %s289 = scalar_lea.vmem %s1, %s288
      %p290 = pneg %p66
      %p291 = pneg %p63
      %p292 = pneg %p87
      %p293 = pneg %p84
      %p294 = pneg %p108
      %p295 = pneg %p105
      %p296 = pneg %p129
      %p297 = pneg %p126
      %p298 = pneg %p150
      %p299 = pneg %p147
      %p300 = pneg %p171
      %p301 = pneg %p168
      %p302 = pneg %p192
      %p303 = pneg %p189
      %p304 = pneg %p218
      %p305 = pneg %p215
      %p306 = scmp.lt.s32.totalorder %s19, 1
      %s307 = scalar_select %p306, %s19, 1
      %s308 = smul.addr %s307, 2
      %s309 = smul.addr %s308, 4
      %s310 = scalar_lea.vmem %s8, %s309
      %p311 = scmp.lt.s32.totalorder %s19, 1
      %s312 = scalar_select %p311, %s19, 1
      %s313 = smul.addr %s312, 2
      %s314 = smul.addr %s313, 4
      %s315 = scalar_lea.vmem %s0, %s314
      %p316 = scmp.lt.s32.totalorder %s19, 1
      %s317 = scalar_select %p316, %s19, 1
      %s318 = smul.addr %s317, 2
      %s319 = smul.addr %s318, 4
      %s320 = scalar_lea.vmem %s1, %s319
      %p321 = scmp.lt.s32.totalorder %s19, 1
      %s322 = scalar_select %p321, %s19, 1
      %s323 = smul.addr %s322, 2
      %s324 = smul.addr %s323, 4
      %s325 = scalar_lea.vmem %s8, %s324
      %v329 = vlaneseq
      %v330 = vand.u32 %v329, 127
      %vm331 = vcmp.lt.s32.totalorder %v330, 0
      %v332 = vsub.s32 0, %v330
      %v333 = vsel %vm331, %v332, %v330
      %v334 = vshrl.u32 %v333, 4
      %v335 = vand.u32 %v333, 15
      %v336 = vsub.s32 0, %v335
      %v337 = vsel %vm331, %v336, %v335
      %vm338 = vcmp.ne.s32.totalorder %v337, 0
      %vm339 = vcmp.lt.s32.totalorder %v337, 0
      %vm340 = vmand %vm339, %vm338
      %v341 = vadd.s32 %v337, 16
      %v342 = vsel %vm340, %v341, %v337
      %vm343 = vcmp.ge.s32.totalorder %v342, 1
      %vm344 = vcmp.lt.s32.totalorder %v342, 15
      %vm345 = vcmask 261120
      %346 = vst.msk [vmem:[#allocation2] sm:$0xff] %vm345, 0
      %vm347 = vcmask 523520
      %348 = vst.msk [vmem:[#allocation2 + $0x8] sm:$0xff] %vm347, 0
      %v349 = vld [vmem:[%s315] sm:$0xf]
      %v350 = vld [vmem:[%s315 + $0x4] sm:$0xf]
      %v353 = vunpack.c.l.b16 %v349
      %v354 = vunpack.c.l.b16 %v350
      %v355 = vpack.c.b16 %v354, %v353
      %356 = vrot.lane.b32.xlu0 %v355, 32
      %v357 = vpop.permute.xlu0 %356
      %vm359 = vcmask 1047808
      %360 = vst.msk [vmem:[#allocation2] sm:$0xff] %vm359, %v357
      %361 = vst.msk [vmem:[#allocation2 + $0x8] sm:$0xff] %vm345, %v357
      %362 = vst.msk [vmem:[#allocation3] sm:$0xff] %vm345, 0
      %363 = vst.msk [vmem:[#allocation3 + $0x8] sm:$0xff] %vm347, 0
      %v364 = vld [vmem:[%s320] sm:$0xf]
      %v365 = vld [vmem:[%s320 + $0x4] sm:$0xf]
      %v368 = vunpack.c.l.b16 %v364
      %v369 = vunpack.c.l.b16 %v365
      %v370 = vpack.c.b16 %v369, %v368
      %371 = vrot.lane.b32.xlu0 %v370, 32
      %v372 = vpop.permute.xlu0 %371
      %374 = vst.msk [vmem:[#allocation3] sm:$0xff] %vm359, %v372
      %375 = vst.msk [vmem:[#allocation3 + $0x8] sm:$0xff] %vm345, %v372
      %v376 = vsel %vm343, 1, 0
      %vm377 = vcmp.eq.s32.totalorder %v376, 1
      %v378 = vsel %vm344, 1, 0
      %vm379 = vcmp.eq.s32.totalorder %v378, 1
      %v380 = vld [vmem:[#allocation3] sm:$0xff]
      %v381 = vld [vmem:[#allocation3 + $0x8] sm:$0xff]
      %vm382 = vmpackc.low %vm377, %vm377
      %v383 = vsel %vm382, 65537, 0
      %v384 = vlaneseq
      %v385 = vshrl.u32 %v384, 7
      %v386 = vsub.s32 0, %v385
      %v387 = vrot.slane %v383, %v386
      %388 = vrot.lane.b32.xlu0 %v387, 15
      %v389 = vpop.permute.xlu0 %388
      %vm390 = vcmp.ne.s16.totalorder %v389, 0
      %v391 = vsel %vm390, %v380, 0
      %v392 = vsel %vm390, %v381, 0
      %395 = vrot.lane.b32.xlu0 %v391, 113
      %v396 = vpop.permute.xlu0 %395
      %397 = vrot.lane.b32.xlu0 %v392, 113
      %v398 = vpop.permute.xlu0 %397
      %vm399 = vcmask 924672
      %v400 = vsel %vm399, %v396, %v398
      %402 = vst [vmem:[#allocation5] sm:$0xff] %v400
      %v403 = vld [vmem:[#allocation3] sm:$0xff]
      %v404 = vld [vmem:[#allocation3 + $0x8] sm:$0xff]
      %407 = vrot.lane.b32.xlu0 %v403, 112
      %v408 = vpop.permute.xlu0 %407
      %409 = vrot.lane.b32.xlu0 %v404, 112
      %v410 = vpop.permute.xlu0 %409
      %vm411 = vcmask 916480
      %v412 = vsel %vm411, %v408, %v410
      %414 = vst [vmem:[#allocation5 + $0x8] sm:$0xff] %v412
      %v415 = vld [vmem:[#allocation3] sm:$0xff]
      %v416 = vld [vmem:[#allocation3 + $0x8] sm:$0xff]
      %vm417 = vmpackc.low %vm379, %vm379
      %v418 = vsel %vm417, 65537, 0
      %v419 = vlaneseq
      %v420 = vshrl.u32 %v419, 7
      %v421 = vsub.s32 0, %v420
      %v422 = vrot.slane %v418, %v421
      %423 = vrot.lane.b32.xlu0 %v422, 17
      %v424 = vpop.permute.xlu0 %423
      %vm425 = vcmp.ne.s16.totalorder %v424, 0
      %v426 = vsel %vm425, %v415, 0
      %v427 = vsel %vm425, %v416, 0
      %430 = vrot.lane.b32.xlu0 %v426, 111
      %v431 = vpop.permute.xlu0 %430
      %432 = vrot.lane.b32.xlu0 %v427, 111
      %v433 = vpop.permute.xlu0 %432
      %vm434 = vcmask 908288
      %v435 = vsel %vm434, %v431, %v433
      %437 = vst [vmem:[#allocation5 + $0x10] sm:$0xff] %v435
      %v438 = vld [vmem:[#allocation2] sm:$0xff]
      %v439 = vld [vmem:[#allocation2 + $0x8] sm:$0xff]
      %440 = vrot.lane.b32.xlu0 %v387, 31
      %v441 = vpop.permute.xlu0 %440
      %vm442 = vcmp.ne.s16.totalorder %v441, 0
      %v443 = vsel %vm442, %v438, 0
      %v444 = vsel %vm442, %v439, 0
      %447 = vrot.lane.b32.xlu0 %v443, 97
      %v448 = vpop.permute.xlu0 %447
      %449 = vrot.lane.b32.xlu0 %v444, 97
      %v450 = vpop.permute.xlu0 %449
      %vm451 = vcmask 793600
      %v452 = vsel %vm451, %v448, %v450
      %454 = vst [vmem:[#allocation5 + $0x18] sm:$0xff] %v452
      %v455 = vld [vmem:[#allocation2] sm:$0xff]
      %v456 = vld [vmem:[#allocation2 + $0x8] sm:$0xff]
      %459 = vrot.lane.b32.xlu0 %v455, 96
      %v460 = vpop.permute.xlu0 %459
      %461 = vrot.lane.b32.xlu0 %v456, 96
      %v462 = vpop.permute.xlu0 %461
      %vm463 = vcmask 785408
      %v464 = vsel %vm463, %v460, %v462
      %466 = vst [vmem:[#allocation5 + $0x20] sm:$0xff] %v464
      %v467 = vld [vmem:[#allocation2] sm:$0xff]
      %v468 = vld [vmem:[#allocation2 + $0x8] sm:$0xff]
      %469 = vrot.lane.b32.xlu0 %v422, 33
      %v470 = vpop.permute.xlu0 %469
      %vm471 = vcmp.ne.s16.totalorder %v470, 0
      %v472 = vsel %vm471, %v467, 0
      %v473 = vsel %vm471, %v468, 0
      %476 = vrot.lane.b32.xlu0 %v472, 95
      %v477 = vpop.permute.xlu0 %476
      %478 = vrot.lane.b32.xlu0 %v473, 95
      %v479 = vpop.permute.xlu0 %478
      %vm480 = vcmask 777216
      %v481 = vsel %vm480, %v477, %v479
      %483 = vst [vmem:[#allocation5 + $0x28] sm:$0xff] %v481
      %v484 = vld [vmem:[#allocation3] sm:$0xff]
      %v485 = vld [vmem:[#allocation3 + $0x8] sm:$0xff]
      %v486 = vsel %vm442, %v484, 0
      %v487 = vsel %vm442, %v485, 0
      %490 = vrot.lane.b32.xlu0 %v486, 97
      %v491 = vpop.permute.xlu0 %490
      %492 = vrot.lane.b32.xlu0 %v487, 97
      %v493 = vpop.permute.xlu0 %492
      %v494 = vsel %vm451, %v491, %v493
      %496 = vst [vmem:[#allocation5 + $0x30] sm:$0xff] %v494
      %v497 = vld [vmem:[#allocation3] sm:$0xff]
      %v498 = vld [vmem:[#allocation3 + $0x8] sm:$0xff]
      %501 = vrot.lane.b32.xlu0 %v497, 96
      %v502 = vpop.permute.xlu0 %501
      %503 = vrot.lane.b32.xlu0 %v498, 96
      %v504 = vpop.permute.xlu0 %503
      %v505 = vsel %vm463, %v502, %v504
      %507 = vst [vmem:[#allocation5 + $0x38] sm:$0xff] %v505
      %v508 = vld [vmem:[#allocation3] sm:$0xff]
      %v509 = vld [vmem:[#allocation3 + $0x8] sm:$0xff]
      %v510 = vsel %vm471, %v508, 0
      %v511 = vsel %vm471, %v509, 0
      %514 = vrot.lane.b32.xlu0 %v510, 95
      %v515 = vpop.permute.xlu0 %514
      %516 = vrot.lane.b32.xlu0 %v511, 95
      %v517 = vpop.permute.xlu0 %516
      %v518 = vsel %vm480, %v515, %v517
      %520 = vst [vmem:[#allocation5 + $0x40] sm:$0xff] %v518
      %v521 = vld [vmem:[%s2] sm:$0xff]
      %v522 = vld [vmem:[%s2 + $0x8] sm:$0xff]
      %v523 = vld [vmem:[#allocation5] sm:$0xff]
      %v524 = vld [vmem:[#allocation5 + $0x8] sm:$0xff]
      %v525 = vld [vmem:[#allocation5 + $0x10] sm:$0xff]
      %v526 = vld [vmem:[#allocation5 + $0x18] sm:$0xff]
      %v527 = vld [vmem:[#allocation5 + $0x20] sm:$0xff]
      %v528 = vld [vmem:[#allocation5 + $0x28] sm:$0xff]
      %v529 = vld [vmem:[#allocation5 + $0x30] sm:$0xff]
      %v530 = vld [vmem:[#allocation5 + $0x38] sm:$0xff]
      %v531 = vld [vmem:[#allocation5 + $0x40] sm:$0xff]
      %v532 = vld [vmem:[%s3] sm:$0xff]
      %v533 = vld [vmem:[%s3 + $0x8] sm:$0xff]
      %535 = vset.pattern.permute.xlu0 0
      %536 = vperm.xlu0 %535, %v532
      %v537 = vpop.permute.xlu0 %536
      %540 = vset.pattern.permute.xlu0 0
      %541 = vperm.xlu0 %540, %v533
      %v542 = vpop.permute.xlu0 %541
      %v546 = vunpack.c.l.b16 %v521
      %v547 = vunpack.c.h.b16 %v521
      %v548 = vunpack.c.l.b16 %v522
      %v549 = vunpack.c.h.b16 %v522
      %v550 = vpack.c.b16 %v548, %v546
      %v551 = vpack.c.b16 %v549, %v547
      %vm553 = vcmask 130048
      %v555 = vsel %vm553, %v551, 0
      %557 = vmatprep.subr.bf16.mxu0 0
      %558 = vmatpush1.bf16.msra.mxu0 %v523
      %559 = vmatprep.subr.bf16.mxu0 0
      %560 = vmatpush1.bf16.msra.mxu0 %v524
      %561 = vmatprep.subr.bf16.mxu0 0
      %562 = vmatpush1.bf16.msra.mxu0 %v525
      %563 = vmatprep.subr.bf16.mxu0 0
      %564 = vmatpush1.bf16.msra.mxu0 %v526
      %565 = vmatprep.subr.bf16.mxu0 0
      %566 = vmatpush1.bf16.msra.mxu0 %v527
      %567 = vmatprep.subr.bf16.mxu0 0
      %568 = vmatpush1.bf16.msra.mxu0 %v528
      %569 = vmatprep.subr.bf16.mxu0 0
      %570 = vmatpush1.bf16.msra.mxu0 %v529
      %571 = vmatprep.subr.bf16.mxu0 0
      %572 = vmatpush1.bf16.msra.mxu0 %v530
      %573 = vmatprep.subr.bf16.mxu0 0
      %574 = vmatpush1.bf16.msra.mxu0 %v531
      %575 = vmatprep.subr.bf16.mxu0 0
      %576 = vmatpush1.bf16.msra.mxu0 0
      %577 = vmatprep.subr.bf16.mxu0 0
      %578 = vmatpush1.bf16.msra.mxu0 0
      %579 = vmatprep.subr.bf16.mxu0 0
      %580 = vmatpush1.bf16.msra.mxu0 0
      %581 = vmatprep.subr.bf16.mxu0 0
      %582 = vmatpush1.bf16.msra.mxu0 0
      %583 = vmatprep.subr.bf16.mxu0 0
      %584 = vmatpush1.bf16.msra.mxu0 0
      %585 = vmatprep.subr.bf16.mxu0 0
      %586 = vmatpush1.bf16.msra.mxu0 0
      %587 = vmatprep.subr.bf16.mxu0 0
      %588 = vmatpush1.bf16.msra.mxu0 0
      %589 = vmatprep.mubr.bf16.mxu0 %v555
      %590 = vmatmul.mubr.bf16.gmra.mrb[0].mxu0 %v550
      %v591 = vpop.f32.mrb[0].mxu0
      %v592 = vadd.f32 %v537, %v591
      %v593 = vpop.f32.mrb[0].mxu0
      %v594 = vpop.f32.mrb[0].mxu0
      %v595 = vadd.f32 %v542, %v594
      %v596 = vpop.f32.mrb[0].mxu0
      %597 = vdwg.mxu0
      %v598 = vmax.f32 %v592, 0.0
      %v599 = vmax.f32 %v595, 0.0
      %600 = vst.msk [vmem:[#allocation4] sm:$0xff] %vm345, 0
      %601 = vst.msk [vmem:[#allocation4 + $0x8] sm:$0xff] %vm347, 0
      %v602 = vpack.c.bf16 %v599, %v598
      %604 = vrot.lane.b32.xlu0 %v602, 32
      %v605 = vpop.permute.xlu0 %604
      %607 = vst.msk [vmem:[#allocation4] sm:$0xff] %vm359, %v605
      %608 = vst.msk [vmem:[#allocation4 + $0x8] sm:$0xff] %vm345, %v605
      %v609 = vld [vmem:[#allocation4] sm:$0xff]
      %v610 = vld [vmem:[#allocation4 + $0x8] sm:$0xff]
      %v611 = vsel %vm390, %v609, 0
      %v612 = vsel %vm390, %v610, 0
      %615 = vrot.lane.b32.xlu0 %v611, 113
      %v616 = vpop.permute.xlu0 %615
      %617 = vrot.lane.b32.xlu0 %v612, 113
      %v618 = vpop.permute.xlu0 %617
      %v619 = vsel %vm399, %v616, %v618
      %621 = vst [vmem:[#allocation6] sm:$0xff] %v619
      %v622 = vld [vmem:[#allocation4] sm:$0xff]
      %v623 = vld [vmem:[#allocation4 + $0x8] sm:$0xff]
      %626 = vrot.lane.b32.xlu0 %v622, 112
      %v627 = vpop.permute.xlu0 %626
      %628 = vrot.lane.b32.xlu0 %v623, 112
      %v629 = vpop.permute.xlu0 %628
      %v630 = vsel %vm411, %v627, %v629
      %632 = vst [vmem:[#allocation6 + $0x8] sm:$0xff] %v630
      %v633 = vld [vmem:[#allocation4] sm:$0xff]
      %v634 = vld [vmem:[#allocation4 + $0x8] sm:$0xff]
      %v635 = vsel %vm425, %v633, 0
      %v636 = vsel %vm425, %v634, 0
      %639 = vrot.lane.b32.xlu0 %v635, 111
      %v640 = vpop.permute.xlu0 %639
      %641 = vrot.lane.b32.xlu0 %v636, 111
      %v642 = vpop.permute.xlu0 %641
      %v643 = vsel %vm434, %v640, %v642
      %645 = vst [vmem:[#allocation6 + $0x10] sm:$0xff] %v643
      %v646 = vld [vmem:[#allocation4] sm:$0xff]
      %v647 = vld [vmem:[#allocation4 + $0x8] sm:$0xff]
      %v648 = vsel %vm442, %v646, 0
      %v649 = vsel %vm442, %v647, 0
      %652 = vrot.lane.b32.xlu0 %v648, 97
      %v653 = vpop.permute.xlu0 %652
      %654 = vrot.lane.b32.xlu0 %v649, 97
      %v655 = vpop.permute.xlu0 %654
      %v656 = vsel %vm451, %v653, %v655
      %658 = vst [vmem:[#allocation6 + $0x18] sm:$0xff] %v656
      %v659 = vld [vmem:[#allocation4] sm:$0xff]
      %v660 = vld [vmem:[#allocation4 + $0x8] sm:$0xff]
      %663 = vrot.lane.b32.xlu0 %v659, 96
      %v664 = vpop.permute.xlu0 %663
      %665 = vrot.lane.b32.xlu0 %v660, 96
      %v666 = vpop.permute.xlu0 %665
      %v667 = vsel %vm463, %v664, %v666
      %669 = vst [vmem:[#allocation6 + $0x20] sm:$0xff] %v667
      %v670 = vld [vmem:[#allocation4] sm:$0xff]
      %v671 = vld [vmem:[#allocation4 + $0x8] sm:$0xff]
      %v672 = vsel %vm471, %v670, 0
      %v673 = vsel %vm471, %v671, 0
      %676 = vrot.lane.b32.xlu0 %v672, 95
      %v677 = vpop.permute.xlu0 %676
      %678 = vrot.lane.b32.xlu0 %v673, 95
      %v679 = vpop.permute.xlu0 %678
      %v680 = vsel %vm480, %v677, %v679
      %682 = vst [vmem:[#allocation6 + $0x28] sm:$0xff] %v680
      %v683 = vld [vmem:[#allocation4] sm:$0xff]
      %v684 = vld [vmem:[#allocation4 + $0x8] sm:$0xff]
      %685 = vrot.lane.b32.xlu0 %v387, 47
      %v686 = vpop.permute.xlu0 %685
      %vm687 = vcmp.ne.s16.totalorder %v686, 0
      %v688 = vsel %vm687, %v683, 0
      %v689 = vsel %vm687, %v684, 0
      %692 = vrot.lane.b32.xlu0 %v688, 81
      %v693 = vpop.permute.xlu0 %692
      %694 = vrot.lane.b32.xlu0 %v689, 81
      %v695 = vpop.permute.xlu0 %694
      %vm696 = vcmask 662528
      %v697 = vsel %vm696, %v693, %v695
      %699 = vst [vmem:[#allocation6 + $0x30] sm:$0xff] %v697
      %v700 = vld [vmem:[#allocation4] sm:$0xff]
      %v701 = vld [vmem:[#allocation4 + $0x8] sm:$0xff]
      %704 = vrot.lane.b32.xlu0 %v700, 80
      %v705 = vpop.permute.xlu0 %704
      %706 = vrot.lane.b32.xlu0 %v701, 80
      %v707 = vpop.permute.xlu0 %706
      %vm708 = vcmask 654336
      %v709 = vsel %vm708, %v705, %v707
      %711 = vst [vmem:[#allocation6 + $0x38] sm:$0xff] %v709
      %v712 = vld [vmem:[#allocation4] sm:$0xff]
      %v713 = vld [vmem:[#allocation4 + $0x8] sm:$0xff]
      %714 = vrot.lane.b32.xlu0 %v422, 49
      %v715 = vpop.permute.xlu0 %714
      %vm716 = vcmp.ne.s16.totalorder %v715, 0
      %v717 = vsel %vm716, %v712, 0
      %v718 = vsel %vm716, %v713, 0
      %721 = vrot.lane.b32.xlu0 %v717, 79
      %v722 = vpop.permute.xlu0 %721
      %723 = vrot.lane.b32.xlu0 %v718, 79
      %v724 = vpop.permute.xlu0 %723
      %vm725 = vcmask 646144
      %v726 = vsel %vm725, %v722, %v724
      %728 = vst [vmem:[#allocation6 + $0x40] sm:$0xff] %v726
      %v729 = vld [vmem:[%s4] sm:$0xff]
      %v730 = vld [vmem:[%s4 + $0x8] sm:$0xff]
      %v731 = vld [vmem:[#allocation6] sm:$0xff]
      %v732 = vld [vmem:[#allocation6 + $0x8] sm:$0xff]
      %v733 = vld [vmem:[#allocation6 + $0x10] sm:$0xff]
      %v734 = vld [vmem:[#allocation6 + $0x18] sm:$0xff]
      %v735 = vld [vmem:[#allocation6 + $0x20] sm:$0xff]
      %v736 = vld [vmem:[#allocation6 + $0x28] sm:$0xff]
      %v737 = vld [vmem:[#allocation6 + $0x30] sm:$0xff]
      %v738 = vld [vmem:[#allocation6 + $0x38] sm:$0xff]
      %v739 = vld [vmem:[#allocation6 + $0x40] sm:$0xff]
      %v740 = vld [vmem:[%s5] sm:$0xff]
      %v741 = vld [vmem:[%s5 + $0x8] sm:$0xff]
      %743 = vset.pattern.permute.xlu0 0
      %744 = vperm.xlu0 %743, %v740
      %v745 = vpop.permute.xlu0 %744
      %748 = vset.pattern.permute.xlu0 0
      %749 = vperm.xlu0 %748, %v741
      %v750 = vpop.permute.xlu0 %749
      %v754 = vunpack.c.l.b16 %v729
      %v755 = vunpack.c.h.b16 %v729
      %v756 = vunpack.c.l.b16 %v730
      %v757 = vunpack.c.h.b16 %v730
      %v758 = vpack.c.b16 %v756, %v754
      %v759 = vpack.c.b16 %v757, %v755
      %v762 = vsel %vm553, %v759, 0
      %764 = vmatprep.subr.bf16.mxu0 0
      %765 = vmatpush1.bf16.msra.mxu0 %v731
      %766 = vmatprep.subr.bf16.mxu0 0
      %767 = vmatpush1.bf16.msra.mxu0 %v732
      %768 = vmatprep.subr.bf16.mxu0 0
      %769 = vmatpush1.bf16.msra.mxu0 %v733
      %770 = vmatprep.subr.bf16.mxu0 0
      %771 = vmatpush1.bf16.msra.mxu0 %v734
      %772 = vmatprep.subr.bf16.mxu0 0
      %773 = vmatpush1.bf16.msra.mxu0 %v735
      %774 = vmatprep.subr.bf16.mxu0 0
      %775 = vmatpush1.bf16.msra.mxu0 %v736
      %776 = vmatprep.subr.bf16.mxu0 0
      %777 = vmatpush1.bf16.msra.mxu0 %v737
      %778 = vmatprep.subr.bf16.mxu0 0
      %779 = vmatpush1.bf16.msra.mxu0 %v738
      %780 = vmatprep.subr.bf16.mxu0 0
      %781 = vmatpush1.bf16.msra.mxu0 %v739
      %782 = vmatprep.subr.bf16.mxu0 0
      %783 = vmatpush1.bf16.msra.mxu0 0
      %784 = vmatprep.subr.bf16.mxu0 0
      %785 = vmatpush1.bf16.msra.mxu0 0
      %786 = vmatprep.subr.bf16.mxu0 0
      %787 = vmatpush1.bf16.msra.mxu0 0
      %788 = vmatprep.subr.bf16.mxu0 0
      %789 = vmatpush1.bf16.msra.mxu0 0
      %790 = vmatprep.subr.bf16.mxu0 0
      %791 = vmatpush1.bf16.msra.mxu0 0
      %792 = vmatprep.subr.bf16.mxu0 0
      %793 = vmatpush1.bf16.msra.mxu0 0
      %794 = vmatprep.subr.bf16.mxu0 0
      %795 = vmatpush1.bf16.msra.mxu0 0
      %796 = vmatprep.mubr.bf16.mxu0 %v762
      %797 = vmatmul.mubr.bf16.gmra.mrb[0].mxu0 %v758
      %v798 = vpop.f32.mrb[0].mxu0
      %v799 = vadd.f32 %v745, %v798
      %v800 = vpop.f32.mrb[0].mxu0
      %v801 = vpop.f32.mrb[0].mxu0
      %v802 = vadd.f32 %v750, %v801
      %v803 = vpop.f32.mrb[0].mxu0
      %804 = vdwg.mxu0
      %v805 = vld [vmem:[%s315] sm:$0xf]
      %v806 = vld [vmem:[%s315 + $0x4] sm:$0xf]
      %v807 = vld [vmem:[%s6] sm:$0xf]
      %v808 = vld [vmem:[%s6 + $0x4] sm:$0xf]
      %v809 = vld [vmem:[%s7] sm:$0xff]
      %v810 = vld [vmem:[%s7 + $0x8] sm:$0xff]
      %812 = vset.pattern.permute.xlu0 0
      %813 = vperm.xlu0 %812, %v809
      %v814 = vpop.permute.xlu0 %813
      %817 = vset.pattern.permute.xlu0 0
      %818 = vperm.xlu0 %817, %v810
      %v819 = vpop.permute.xlu0 %818
      %v823 = vunpack.c.l.b16 %v807
      %v824 = vunpack.c.l.b16 %v808
      %v825 = vpack.c.b16 %v824, %v823
      %v828 = vunpack.c.l.b16 %v805
      %v829 = vunpack.c.l.b16 %v806
      %v830 = vpack.c.b16 %v829, %v828
      %v833 = vsel %vm553, %v825, 0
      %835 = vmatprep.subr.bf16.mxu0 0
      %836 = vmatpush1.bf16.msra.mxu0 %v830
      %837 = vmatprep.subr.bf16.mxu0 0
      %838 = vmatpush1.bf16.msra.mxu0 0
      %839 = vmatprep.subr.bf16.mxu0 0
      %840 = vmatpush1.bf16.msra.mxu0 0
      %841 = vmatprep.subr.bf16.mxu0 0
      %842 = vmatpush1.bf16.msra.mxu0 0
      %843 = vmatprep.subr.bf16.mxu0 0
      %844 = vmatpush1.bf16.msra.mxu0 0
      %845 = vmatprep.subr.bf16.mxu0 0
      %846 = vmatpush1.bf16.msra.mxu0 0
      %847 = vmatprep.subr.bf16.mxu0 0
      %848 = vmatpush1.bf16.msra.mxu0 0
      %849 = vmatprep.subr.bf16.mxu0 0
      %850 = vmatpush1.bf16.msra.mxu0 0
      %851 = vmatprep.subr.bf16.mxu0 0
      %852 = vmatpush1.bf16.msra.mxu0 0
      %853 = vmatprep.subr.bf16.mxu0 0
      %854 = vmatpush1.bf16.msra.mxu0 0
      %855 = vmatprep.subr.bf16.mxu0 0
      %856 = vmatpush1.bf16.msra.mxu0 0
      %857 = vmatprep.subr.bf16.mxu0 0
      %858 = vmatpush1.bf16.msra.mxu0 0
      %859 = vmatprep.subr.bf16.mxu0 0
      %860 = vmatpush1.bf16.msra.mxu0 0
      %861 = vmatprep.subr.bf16.mxu0 0
      %862 = vmatpush1.bf16.msra.mxu0 0
      %863 = vmatprep.subr.bf16.mxu0 0
      %864 = vmatpush1.bf16.msra.mxu0 0
      %865 = vmatprep.subr.bf16.mxu0 0
      %866 = vmatpush1.bf16.msra.mxu0 0
      %867 = vmatprep.mubr.bf16.mxu0 0
      %868 = vmatmul.mubr.bf16.gmra.mrb[0].mxu0 %v833
      %v869 = vpop.f32.mrb[0].mxu0
      %v870 = vadd.f32 %v814, %v869
      %v871 = vpop.f32.mrb[0].mxu0
      %v872 = vpop.f32.mrb[0].mxu0
      %v873 = vadd.f32 %v819, %v872
      %v874 = vpop.f32.mrb[0].mxu0
      %875 = vdwg.mxu0
      %v876 = vadd.f32 %v799, %v870
      %v877 = vadd.f32 %v802, %v873
      %v878 = vmax.f32 %v876, 0.0
      %v879 = vmax.f32 %v877, 0.0
      %v880 = vpack.c.bf16 %v879, %v878
      %v882 = vunpack.c.l.b16 %v880
      %v883 = vunpack.c.h.b16 %v880
      %v884 = vpack.c.b16 %v882, %v882
      %v885 = vpack.c.b16 %v883, %v883
      %888 = vst [vmem:[%s325] sm:$0xf] %v884
      %889 = vst [vmem:[%s325 + $0x4] sm:$0xf] %v885
      %p890 = scmp.lt.s32.totalorder %s19, 1
      %s891 = scalar_select %p890, %s19, 1
      %s892 = smul.addr %s891, 2
      %s893 = smul.addr %s892, 4
      %s894 = scalar_lea.vmem %s8, %s893
      // Predicated region
      $region53: #{basic_res_block.1} parent=51 // pred_check
        %p895 = pneg %p215
      $region54: #{basic_res_block.1} parent=51 // pred_check_branch
        %897 = sbr.rel (%p895) target = $region56
      $region55: #{basic_res_block.1} parent=51 // pred_region
        _
      $region56: #{basic_res_block.1} parent=51 // pred_fallthru
        _
    $region52: #{basic_res_block.1} parent=5 // pred_fallthru
      _
    %p898 = scmp.le.s32.totalorder 2, %s14
    // Predicated region
    $region57: #{basic_res_block.1} parent=5 // pred_check
      %p899 = pneg %p898
    $region58: #{basic_res_block.1} parent=5 // pred_check_branch
      %901 = sbr.rel (%p899) target = $region60
    $region59: #{basic_res_block.1} parent=5 // pred_region
      %s902 = ssub.s32 %s14, 2
      // Predicated region
      $region61: #{basic_res_block.1} parent=59 // pred_check
        %p903 = pneg %p221
      $region62: #{basic_res_block.1} parent=59 // pred_check_branch
        %905 = sbr.rel (%p903) target = $region64
      $region63: #{basic_res_block.1} parent=59 // pred_region
        %p906 = scmp.lt.s32.totalorder %s20, 1
        %s907 = scalar_select %p906, %s20, 1
        %s908 = smul.addr %s907, 2
        %s909 = smul.addr %s908, 4
        %s910 = scalar_lea.vmem %s8, %s909
      $region64: #{basic_res_block.1} parent=59 // pred_fallthru
        _
    $region60: #{basic_res_block.1} parent=5 // pred_fallthru
      _
  $region6: #{basic_res_block.1} parent=0 // loop_footer
    %s18 = sadd.s32 1, %s14
  $region7: #{basic_res_block.1} parent=0 // loop_footer_branch
    %13 = sbr.rel target = $region3
  $region8: #{basic_res_block.1} parent=0 // loop_exit
    _

</llo_original>
